<compile_context>
chip_gen: v5e
topology: v5e:2x2
jax: 0.10.0
libtpu: 0.0.40
codegen_flags: <defaults>
</compile_context>

<pallas_src>
import jax
import jax.numpy as jnp
from jax.experimental import pallas as pl
from jax.experimental.pallas import tpu as pltpu

LANE = 128      # lane width: every weight block / activation is 128 lanes wide
SUB = 8         # sublane alignment for the graph (batch) dimension
NEG_INF = -1e30

WEIGHT_NAMES = ('w1', 'w2', 'w3', 'w4', 'we', 'wl1x', 'wl1e', 'wl2')
BIAS_NAMES = ('b1', 'b2', 'b3', 'b4', 'be', 'bl1', 'bl2')


def _round_up(n, m):
    return ((n + m - 1) // m) * m


def _leaky(v):
    # LeakyReLU(0.01) as a single vmax.
    return jnp.maximum(v, 0.01 * v)


# ----------------------------- Pallas kernel -------------------------------- #

def make_net_kernel(w_rows, b_rows):
    """Kernel closure over static row offsets into the packed parameter slabs."""

    def kernel(x_ref, m_ref, pb_ref, e_ref, w_ref, b_ref, out_ref):
        bf16 = jnp.bfloat16

        def W(name):
            # Full 128x128, tile-aligned, unmasked load (offsets are multiples of 128).
            return w_ref[pl.ds(w_rows[name], LANE), :]        # bf16 (128, 128)

        def B(name):
            return b_ref[pl.ds(b_rows[name], 1), :]           # f32  (1, 128)

        x = x_ref[...]                                        # bf16 [Np, 128]
        M = m_ref[...]                                        # bf16 [Np, Np]

        # ---- MPNN 0: Linear+BN(folded) -> (Dropout=id) -> LeakyReLU -> Linear
        #      -> propagate (M @ h) ; then F.leaky_relu from Net.forward
        h = jnp.dot(x, W('w1'), preferred_element_type=jnp.float32) + B('b1')
        h = _leaky(h)
        h = jnp.dot(h.astype(bf16), W('w2'),
                    preferred_element_type=jnp.float32) + B('b2')
        h = jnp.dot(M, h.astype(bf16), preferred_element_type=jnp.float32)
        h = _leaky(h)

        # ---- MPNN 1
        g = jnp.dot(h.astype(bf16), W('w3'),
                    preferred_element_type=jnp.float32) + B('b3')
        g = _leaky(g)
        g = jnp.dot(g.astype(bf16), W('w4'),
                    preferred_element_type=jnp.float32) + B('b4')
        g = jnp.dot(M, g.astype(bf16), preferred_element_type=jnp.float32)
        g = _leaky(g)

        # ---- global_max_pool: additive mask (0 for member node, -1e30 otherwise)
        pb = pb_ref[...]                                      # f32 [Bp, Np]
        pooled = jnp.max(g[None, :, :] + pb[:, :, None], axis=1)   # f32 [Bp, 128]

        # ---- energy embedding: Linear+BN(folded) -> LeakyReLU
        e = jnp.dot(e_ref[...], W('we'),
                    preferred_element_type=jnp.float32) + B('be')
        e = _leaky(e)                                         # f32 [Bp, 128]

        # ---- final MLP: concat expressed as a split matmul (BN folded, Dropout=id)
        z = (jnp.dot(pooled.astype(bf16), W('wl1x'), preferred_element_type=jnp.float32)
             + jnp.dot(e.astype(bf16), W('wl1e'), preferred_element_type=jnp.float32)
             + B('bl1'))
        z = _leaky(z)
        out = jnp.dot(z.astype(bf16), W('wl2'),
                      preferred_element_type=jnp.float32) + B('bl2')
        out_ref[...] = out                                    # f32 [Bp, 128] (lane-dense)

    return kernel


# ------------------------------ Host-side glue ------------------------------- #

def build_prop_matrix(edge_index, edge_attr, num_nodes):
    """Dense propagation matrix = add_self_loops(fill=1) + unweighted-deg sym-norm
    + scatter-add at the target (flow='source_to_target', aggr='add')."""
    row = edge_index[0]
    col = edge_index[1]
    loop = jnp.arange(num_nodes, dtype=row.dtype)
    row = jnp.concatenate([row, loop])
    col = jnp.concatenate([col, loop])
    attr = jnp.concatenate(
        [edge_attr.reshape(-1).astype(jnp.float32),
         jnp.ones((num_nodes,), jnp.float32)])                 # self-loop attr = 1.0
    deg = jnp.zeros((num_nodes,), jnp.float32).at[row].add(1.0)  # unweighted degree(row)
    deg_inv_sqrt = deg ** -0.5                                   # self-loops => deg >= 1
    norm = deg_inv_sqrt[row] * deg_inv_sqrt[col]
    w = norm * attr
    # message flows source (row) -> target (col); aggregate-add at target.
    return jnp.zeros((num_nodes, num_nodes), jnp.float32).at[col, row].add(w)


def _linear_init(key, fi, fo, scale=0.1):
    kw, kb = jax.random.split(key)
    return (scale * jax.random.normal(kw, (fi, fo), jnp.float32),
            scale * jax.random.normal(kb, (1, fo), jnp.float32))


def _bn_init(key, f, eps=1e-5):
    kg, kb = jax.random.split(key)
    gamma = 1.0 + 0.1 * jax.random.normal(kg, (1, f), jnp.float32)
    beta = 0.1 * jax.random.normal(kb, (1, f), jnp.float32)
    run_mean = jnp.zeros((1, f), jnp.float32)
    run_var = jnp.ones((1, f), jnp.float32)
    s = gamma / jnp.sqrt(run_var + eps)
    t = beta - run_mean * s
    return s, t


def init_params(key, input_dim, hidden_dim, output_dim):
    ks = jax.random.split(key, 10)
    w1, b1 = _linear_init(ks[0], input_dim, hidden_dim)      # mpnn_0.lin[0]
    s1, t1 = _bn_init(ks[1], hidden_dim)                     # mpnn_0.lin[1]
    w2, b2 = _linear_init(ks[2], hidden_dim, hidden_dim)     # mpnn_0.lin[4]
    w3, b3 = _linear_init(ks[3], hidden_dim, hidden_dim)     # mpnn_1.lin[0]
    s3, t3 = _bn_init(ks[4], hidden_dim)                     # mpnn_1.lin[1]
    w4, b4 = _linear_init(ks[5], hidden_dim, output_dim)     # mpnn_1.lin[4]
    we, be = _linear_init(ks[6], 21, 8)                      # emb[0]
    se, te = _bn_init(ks[7], 8)                              # emb[1]
    wl1, bl1 = _linear_init(ks[8], output_dim + 8, output_dim)  # lin[0]
    wl1x, wl1e = wl1[:output_dim], wl1[output_dim:]
    sl, tl = _bn_init(ks[9], output_dim)                     # lin[1]
    kw2 = jax.random.fold_in(key, 123)
    wl2, bl2 = _linear_init(kw2, output_dim, 1)              # lin[4]
    return (w1, b1, s1, t1, w2, b2,
            w3, b3, s3, t3, w4, b4,
            we, be, se, te,
            wl1x, wl1e, bl1, sl, tl, wl2, bl2)


def fold_params(params):
    """Fold eval-mode BatchNorm (y = s*x + t) into the preceding Linear (exact, f32)."""
    (w1, b1, s1, t1, w2, b2,
     w3, b3, s3, t3, w4, b4,
     we, be, se, te,
     wl1x, wl1e, bl1, sl, tl, wl2, bl2) = params
    weights = {'w1': w1 * s1, 'w2': w2, 'w3': w3 * s3, 'w4': w4,
               'we': we * se, 'wl1x': wl1x * sl, 'wl1e': wl1e * sl, 'wl2': wl2}
    biases = {'b1': b1 * s1 + t1, 'b2': b2, 'b3': b3 * s3 + t3, 'b4': b4,
              'be': be * se + te, 'bl1': bl1 * sl + tl, 'bl2': bl2}
    return weights, biases


def prepare_packed_params(params):
    """Pack folded params into one 128x128-tiled bf16 weight slab + one f32 bias slab."""
    weights, biases = fold_params(params)

    w_rows, blocks = {}, []
    for i, name in enumerate(WEIGHT_NAMES):
        w = weights[name]
        fi, fo = int(w.shape[0]), int(w.shape[1])
        blk = jnp.zeros((LANE, LANE), jnp.float32).at[:fi, :fo].set(w)
        w_rows[name] = i * LANE
        blocks.append(blk)
    wbuf = jnp.concatenate(blocks, axis=0).astype(jnp.bfloat16)   # [8*128, 128] bf16

    b_rows = {}
    bbuf = jnp.zeros((_round_up(len(BIAS_NAMES), SUB), LANE), jnp.float32)
    for i, name in enumerate(BIAS_NAMES):
        b = biases[name].reshape(-1)
        bbuf = bbuf.at[i, :b.shape[0]].set(b)
        b_rows[name] = i

    return wbuf, w_rows, bbuf, b_rows


def make_forward(w_rows, b_rows, num_graphs):
    """Build the fully-jitted forward (prep + pallas_call + output slice)."""
    kernel = make_net_kernel(w_rows, b_rows)

    @jax.jit
    def forward(x, edge_index, edge_attr, batch, energy, wbuf, bbuf):
        n, in_dim = x.shape
        n_pad = _round_up(max(n, LANE), LANE)
        b_pad = _round_up(max(num_graphs, SUB), SUB)

        # Dense propagation matrix (fine at these sizes; see TODO at top for large N).
        m = build_prop_matrix(edge_index, edge_attr, n)
        m_pad = (jnp.zeros((n_pad, n_pad), jnp.float32)
                 .at[:n, :n].set(m).astype(jnp.bfloat16))

        x_pad = (jnp.zeros((n_pad, LANE), jnp.float32)
                 .at[:n, :in_dim].set(x).astype(jnp.bfloat16))

        batch_pad = jnp.full((n_pad,), -1, jnp.int32).at[:n].set(batch.astype(jnp.int32))
        member = batch_pad[None, :] == jnp.arange(b_pad, dtype=jnp.int32)[:, None]
        pb = jnp.where(member, 0.0, NEG_INF).astype(jnp.float32)     # [Bp, Np]

        e = energy.reshape(num_graphs, 21)
        e_pad = (jnp.zeros((b_pad, LANE), jnp.float32)
                 .at[:num_graphs, :21].set(e).astype(jnp.bfloat16))

        args = (x_pad, m_pad, pb, e_pad, wbuf, bbuf)

        # Rough cost hint for the XLA scheduler.
        flops = 2 * LANE * LANE * (6 * n_pad + 4 * b_pad)
        bytes_accessed = (sum(int(a.size) * a.dtype.itemsize for a in args)
                          + b_pad * LANE * 4)

        out = pl.pallas_call(
            kernel,
            out_shape=jax.ShapeDtypeStruct((b_pad, LANE), jnp.float32),
            in_specs=[pl.BlockSpec(memory_space=pltpu.MemorySpace.VMEM)] * len(args),
            out_specs=pl.BlockSpec(memory_space=pltpu.MemorySpace.VMEM),
            cost_estimate=pl.CostEstimate(flops=flops, transcendentals=0,
                                          bytes_accessed=bytes_accessed),
        )(*args)
        return out[:num_graphs, :1]

    return forward


# -------------------------- Pure-JAX f32 reference --------------------------- #

def reference_forward(params, x, edge_index, edge_attr, batch, energy, num_graphs):
    weights, biases = fold_params(params)
    n = x.shape[0]
    m = build_prop_matrix(edge_index, edge_attr, n)

    def leaky(v):
        return jnp.where(v > 0, v, 0.01 * v)

    h = leaky(x @ weights['w1'] + biases['b1'])
    h = leaky(m @ (h @ weights['w2'] + biases['b2']))
    g = leaky(h @ weights['w3'] + biases['b3'])
    g = leaky(m @ (g @ weights['w4'] + biases['b4']))
    member = batch[None, :] == jnp.arange(num_graphs)[:, None]
    pooled = jnp.max(jnp.where(member[:, :, None], g[None, :, :], -jnp.inf), axis=1)
    e = energy.reshape(num_graphs, 21)
    e = leaky(e @ weights['we'] + biases['be'])
    z = leaky(pooled @ weights['wl1x'] + e @ weights['wl1e'] + biases['bl1'])
    return z @ weights['wl2'] + biases['bl2']


# ----------------------------------- main ------------------------------------ #

if __name__ == "__main__":
    INPUT_DIM, HIDDEN_DIM, OUTPUT_DIM = 4, 32, 16
    N_NODES, N_EDGES, N_GRAPHS = 16, 24, 2

    key = jax.random.PRNGKey(0)
    k_x, k_ei, k_ea, k_en, k_p = jax.random.split(key, 5)

    x = jax.random.normal(k_x, (N_NODES, INPUT_DIM), jnp.float32)
    edge_index = jax.random.randint(k_ei, (2, N_EDGES), 0, N_NODES, jnp.int32)
    edge_attr = jax.random.uniform(k_ea, (N_EDGES,), jnp.float32)
    batch = jnp.concatenate([
        jnp.zeros((N_NODES // 2,), jnp.int32),
        jnp.ones((N_NODES - N_NODES // 2,), jnp.int32),
    ])
    energy = jax.random.normal(k_en, (N_GRAPHS * 21,), jnp.float32)

    params = init_params(k_p, INPUT_DIM, HIDDEN_DIM, OUTPUT_DIM)
    wbuf, w_rows, bbuf, b_rows = prepare_packed_params(params)
    forward = make_forward(w_rows, b_rows, N_GRAPHS)

    out = forward(x, edge_index, edge_attr, batch, energy, wbuf, bbuf)
    out = jax.block_until_ready(out)
    assert out.shape == (N_GRAPHS, 1)

    ref = reference_forward(params, x, edge_index, edge_attr, batch, energy, N_GRAPHS)
    assert jnp.allclose(out, ref, atol=5e-2, rtol=5e-2), (out, ref)

    print("KERNEL_OK")
</pallas_src>

<mosaic_0001>
module attributes {stable_mosaic.version = 11 : i64} {
  func.func @kernel(%arg0: memref<128x128xbf16, #tpu.memory_space<vmem>>, %arg1: memref<128x128xbf16, #tpu.memory_space<vmem>>, %arg2: memref<8x128xf32, #tpu.memory_space<vmem>>, %arg3: memref<8x128xbf16, #tpu.memory_space<vmem>>, %arg4: memref<1024x128xbf16, #tpu.memory_space<vmem>>, %arg5: memref<8x128xf32, #tpu.memory_space<vmem>>, %arg6: memref<8x128xf32, #tpu.memory_space<vmem>>) attributes {dimension_semantics = [], scalar_prefetch = 0 : i64, scratch_operands = 0 : i64, tpu.core_type = #tpu.core_type<tc>} {
    %c0 = arith.constant 0 : index
    %c0_0 = arith.constant 0 : index
    %0 = vector.load %arg0[%c0, %c0_0] : memref<128x128xbf16, #tpu.memory_space<vmem>>, vector<128x128xbf16>
    %c0_1 = arith.constant 0 : index
    %c0_2 = arith.constant 0 : index
    %1 = vector.load %arg1[%c0_1, %c0_2] : memref<128x128xbf16, #tpu.memory_space<vmem>>, vector<128x128xbf16>
    %c0_3 = arith.constant 0 : index
    %c0_4 = arith.constant 0 : index
    %2 = vector.load %arg4[%c0_3, %c0_4] : memref<1024x128xbf16, #tpu.memory_space<vmem>>, vector<128x128xbf16>
    %cst = arith.constant dense<0.000000e+00> : vector<128x128xf32>
    %3 = tpu.matmul %0, %2, %cst {dimension_numbers = #tpu.dot_dimension_numbers<[1], [0], [0], [1], [0, 0, 1, 1], [], []>} : vector<128x128xbf16>, vector<128x128xbf16>, vector<128x128xf32> -> vector<128x128xf32>
    %c0_5 = arith.constant 0 : index
    %c0_6 = arith.constant 0 : index
    %4 = vector.load %arg5[%c0_5, %c0_6] : memref<8x128xf32, #tpu.memory_space<vmem>>, vector<1x128xf32>
    %5 = vector.broadcast %4 : vector<1x128xf32> to vector<128x128xf32>
    %6 = arith.addf %3, %5 : vector<128x128xf32>
    %cst_7 = arith.constant 0.00999999977 : f32
    %7 = vector.broadcast %cst_7 : f32 to vector<128x128xf32>
    %8 = arith.mulf %7, %6 : vector<128x128xf32>
    %9 = arith.maximumf %6, %8 : vector<128x128xf32>
    %10 = arith.truncf %9 : vector<128x128xf32> to vector<128x128xbf16>
    %c128 = arith.constant 128 : index
    %c0_8 = arith.constant 0 : index
    %11 = vector.load %arg4[%c128, %c0_8] : memref<1024x128xbf16, #tpu.memory_space<vmem>>, vector<128x128xbf16>
    %cst_9 = arith.constant dense<0.000000e+00> : vector<128x128xf32>
    %12 = tpu.matmul %10, %11, %cst_9 {dimension_numbers = #tpu.dot_dimension_numbers<[1], [0], [0], [1], [0, 0, 1, 1], [], []>} : vector<128x128xbf16>, vector<128x128xbf16>, vector<128x128xf32> -> vector<128x128xf32>
    %c1 = arith.constant 1 : index
    %c0_10 = arith.constant 0 : index
    %13 = vector.load %arg5[%c1, %c0_10] : memref<8x128xf32, #tpu.memory_space<vmem>>, vector<1x128xf32>
    %14 = vector.broadcast %13 : vector<1x128xf32> to vector<128x128xf32>
    %15 = arith.addf %12, %14 : vector<128x128xf32>
    %16 = arith.truncf %15 : vector<128x128xf32> to vector<128x128xbf16>
    %cst_11 = arith.constant dense<0.000000e+00> : vector<128x128xf32>
    %17 = tpu.matmul %1, %16, %cst_11 {dimension_numbers = #tpu.dot_dimension_numbers<[1], [0], [0], [1], [0, 0, 1, 1], [], []>} : vector<128x128xbf16>, vector<128x128xbf16>, vector<128x128xf32> -> vector<128x128xf32>
    %cst_12 = arith.constant 0.00999999977 : f32
    %18 = vector.broadcast %cst_12 : f32 to vector<128x128xf32>
    %19 = arith.mulf %18, %17 : vector<128x128xf32>
    %20 = arith.maximumf %17, %19 : vector<128x128xf32>
    %21 = arith.truncf %20 : vector<128x128xf32> to vector<128x128xbf16>
    %c256 = arith.constant 256 : index
    %c0_13 = arith.constant 0 : index
    %22 = vector.load %arg4[%c256, %c0_13] : memref<1024x128xbf16, #tpu.memory_space<vmem>>, vector<128x128xbf16>
    %cst_14 = arith.constant dense<0.000000e+00> : vector<128x128xf32>
    %23 = tpu.matmul %21, %22, %cst_14 {dimension_numbers = #tpu.dot_dimension_numbers<[1], [0], [0], [1], [0, 0, 1, 1], [], []>} : vector<128x128xbf16>, vector<128x128xbf16>, vector<128x128xf32> -> vector<128x128xf32>
    %c2 = arith.constant 2 : index
    %c0_15 = arith.constant 0 : index
    %24 = vector.load %arg5[%c2, %c0_15] : memref<8x128xf32, #tpu.memory_space<vmem>>, vector<1x128xf32>
    %25 = vector.broadcast %24 : vector<1x128xf32> to vector<128x128xf32>
    %26 = arith.addf %23, %25 : vector<128x128xf32>
    %cst_16 = arith.constant 0.00999999977 : f32
    %27 = vector.broadcast %cst_16 : f32 to vector<128x128xf32>
    %28 = arith.mulf %27, %26 : vector<128x128xf32>
    %29 = arith.maximumf %26, %28 : vector<128x128xf32>
    %30 = arith.truncf %29 : vector<128x128xf32> to vector<128x128xbf16>
    %c384 = arith.constant 384 : index
    %c0_17 = arith.constant 0 : index
    %31 = vector.load %arg4[%c384, %c0_17] : memref<1024x128xbf16, #tpu.memory_space<vmem>>, vector<128x128xbf16>
    %cst_18 = arith.constant dense<0.000000e+00> : vector<128x128xf32>
    %32 = tpu.matmul %30, %31, %cst_18 {dimension_numbers = #tpu.dot_dimension_numbers<[1], [0], [0], [1], [0, 0, 1, 1], [], []>} : vector<128x128xbf16>, vector<128x128xbf16>, vector<128x128xf32> -> vector<128x128xf32>
    %c3 = arith.constant 3 : index
    %c0_19 = arith.constant 0 : index
    %33 = vector.load %arg5[%c3, %c0_19] : memref<8x128xf32, #tpu.memory_space<vmem>>, vector<1x128xf32>
    %34 = vector.broadcast %33 : vector<1x128xf32> to vector<128x128xf32>
    %35 = arith.addf %32, %34 : vector<128x128xf32>
    %36 = arith.truncf %35 : vector<128x128xf32> to vector<128x128xbf16>
    %cst_20 = arith.constant dense<0.000000e+00> : vector<128x128xf32>
    %37 = tpu.matmul %1, %36, %cst_20 {dimension_numbers = #tpu.dot_dimension_numbers<[1], [0], [0], [1], [0, 0, 1, 1], [], []>} : vector<128x128xbf16>, vector<128x128xbf16>, vector<128x128xf32> -> vector<128x128xf32>
    %cst_21 = arith.constant 0.00999999977 : f32
    %38 = vector.broadcast %cst_21 : f32 to vector<128x128xf32>
    %39 = arith.mulf %38, %37 : vector<128x128xf32>
    %40 = arith.maximumf %37, %39 : vector<128x128xf32>
    %c0_22 = arith.constant 0 : index
    %c0_23 = arith.constant 0 : index
    %41 = vector.load %arg2[%c0_22, %c0_23] : memref<8x128xf32, #tpu.memory_space<vmem>>, vector<8x128xf32>
    %42 = vector.shape_cast %40 : vector<128x128xf32> to vector<1x128x128xf32>
    %43 = vector.shape_cast %41 : vector<8x128xf32> to vector<8x128x1xf32>
    %44 = vector.broadcast %42 : vector<1x128x128xf32> to vector<8x128x128xf32>
    %45 = vector.broadcast %43 : vector<8x128x1xf32> to vector<8x128x128xf32>
    %46 = arith.addf %44, %45 : vector<8x128x128xf32>
    %cst_24 = arith.constant dense<0xFF800000> : vector<8x128xf32>
    %47 = vector.multi_reduction <maximumf>, %46, %cst_24 [1] : vector<8x128x128xf32> to vector<8x128xf32>
    %c0_25 = arith.constant 0 : index
    %c0_26 = arith.constant 0 : index
    %48 = vector.load %arg3[%c0_25, %c0_26] : memref<8x128xbf16, #tpu.memory_space<vmem>>, vector<8x128xbf16>
    %c512 = arith.constant 512 : index
    %c0_27 = arith.constant 0 : index
    %49 = vector.load %arg4[%c512, %c0_27] : memref<1024x128xbf16, #tpu.memory_space<vmem>>, vector<128x128xbf16>
    %cst_28 = arith.constant dense<0.000000e+00> : vector<8x128xf32>
    %50 = tpu.matmul %48, %49, %cst_28 {dimension_numbers = #tpu.dot_dimension_numbers<[1], [0], [0], [1], [0, 0, 1, 1], [], []>} : vector<8x128xbf16>, vector<128x128xbf16>, vector<8x128xf32> -> vector<8x128xf32>
    %c4 = arith.constant 4 : index
    %c0_29 = arith.constant 0 : index
    %51 = vector.load %arg5[%c4, %c0_29] : memref<8x128xf32, #tpu.memory_space<vmem>>, vector<1x128xf32>
    %52 = vector.broadcast %51 : vector<1x128xf32> to vector<8x128xf32>
    %53 = arith.addf %50, %52 : vector<8x128xf32>
    %cst_30 = arith.constant 0.00999999977 : f32
    %54 = vector.broadcast %cst_30 : f32 to vector<8x128xf32>
    %55 = arith.mulf %54, %53 : vector<8x128xf32>
    %56 = arith.maximumf %53, %55 : vector<8x128xf32>
    %57 = arith.truncf %47 : vector<8x128xf32> to vector<8x128xbf16>
    %c640 = arith.constant 640 : index
    %c0_31 = arith.constant 0 : index
    %58 = vector.load %arg4[%c640, %c0_31] : memref<1024x128xbf16, #tpu.memory_space<vmem>>, vector<128x128xbf16>
    %cst_32 = arith.constant dense<0.000000e+00> : vector<8x128xf32>
    %59 = tpu.matmul %57, %58, %cst_32 {dimension_numbers = #tpu.dot_dimension_numbers<[1], [0], [0], [1], [0, 0, 1, 1], [], []>} : vector<8x128xbf16>, vector<128x128xbf16>, vector<8x128xf32> -> vector<8x128xf32>
    %60 = arith.truncf %56 : vector<8x128xf32> to vector<8x128xbf16>
    %c768 = arith.constant 768 : index
    %c0_33 = arith.constant 0 : index
    %61 = vector.load %arg4[%c768, %c0_33] : memref<1024x128xbf16, #tpu.memory_space<vmem>>, vector<128x128xbf16>
    %cst_34 = arith.constant dense<0.000000e+00> : vector<8x128xf32>
    %62 = tpu.matmul %60, %61, %cst_34 {dimension_numbers = #tpu.dot_dimension_numbers<[1], [0], [0], [1], [0, 0, 1, 1], [], []>} : vector<8x128xbf16>, vector<128x128xbf16>, vector<8x128xf32> -> vector<8x128xf32>
    %63 = arith.addf %59, %62 : vector<8x128xf32>
    %c5 = arith.constant 5 : index
    %c0_35 = arith.constant 0 : index
    %64 = vector.load %arg5[%c5, %c0_35] : memref<8x128xf32, #tpu.memory_space<vmem>>, vector<1x128xf32>
    %65 = vector.broadcast %64 : vector<1x128xf32> to vector<8x128xf32>
    %66 = arith.addf %63, %65 : vector<8x128xf32>
    %cst_36 = arith.constant 0.00999999977 : f32
    %67 = vector.broadcast %cst_36 : f32 to vector<8x128xf32>
    %68 = arith.mulf %67, %66 : vector<8x128xf32>
    %69 = arith.maximumf %66, %68 : vector<8x128xf32>
    %70 = arith.truncf %69 : vector<8x128xf32> to vector<8x128xbf16>
    %c896 = arith.constant 896 : index
    %c0_37 = arith.constant 0 : index
    %71 = vector.load %arg4[%c896, %c0_37] : memref<1024x128xbf16, #tpu.memory_space<vmem>>, vector<128x128xbf16>
    %cst_38 = arith.constant dense<0.000000e+00> : vector<8x128xf32>
    %72 = tpu.matmul %70, %71, %cst_38 {dimension_numbers = #tpu.dot_dimension_numbers<[1], [0], [0], [1], [0, 0, 1, 1], [], []>} : vector<8x128xbf16>, vector<128x128xbf16>, vector<8x128xf32> -> vector<8x128xf32>
    %c6 = arith.constant 6 : index
    %c0_39 = arith.constant 0 : index
    %73 = vector.load %arg5[%c6, %c0_39] : memref<8x128xf32, #tpu.memory_space<vmem>>, vector<1x128xf32>
    %74 = vector.broadcast %73 : vector<1x128xf32> to vector<8x128xf32>
    %75 = arith.addf %72, %74 : vector<8x128xf32>
    %c0_40 = arith.constant 0 : index
    %c0_41 = arith.constant 0 : index
    %76 = vector.load %arg6[%c0_40, %c0_41] : memref<8x128xf32, #tpu.memory_space<vmem>>, vector<8x128xf32>
    tpu.vector_store %arg6[%c0_40, %c0_41], %75 {strides = array<i32>} : memref<8x128xf32, #tpu.memory_space<vmem>>, vector<8x128xf32>,
    return
  }
}

</mosaic_0001>

<llo_original>
// kernel: forward.1
$region0: #{forward.1}
  #allocation0 [shape = 'u32[]', space=smem, size = 0x4, offset = 0x4, fixed_abs, tag = 'smem constant byte address 0x4 - core index']
  #allocation1 [shape = 'u32[72,128]{1,0:T(1,128)}', space=vmem, size = 0x9000, scoped, tag = 'internal scratch']
  %s0 = inlined_call_operand.vmem [shape: bf16[128,128], index: 0, kind: input, shape index: {}]
  %s1 = inlined_call_operand.vmem [shape: bf16[128,128], index: 1, kind: input, shape index: {}]
  %s2 = inlined_call_operand.vmem [shape: f32[8,128], index: 2, kind: input, shape index: {}]
  %s3 = inlined_call_operand.vmem [shape: bf16[8,128], index: 3, kind: input, shape index: {}]
  %s4 = inlined_call_operand.vmem [shape: bf16[1024,128], index: 4, kind: input, shape index: {}]
  %s5 = inlined_call_operand.vmem [shape: f32[8,128], index: 5, kind: input, shape index: {}]
  %s6 = inlined_call_operand.vmem [shape: f32[8,128], index: 6, kind: output, shape index: {}]
  %s7 = sld [smem:[#allocation0]]
  $region34: #{forward.1} parent=0
    _
  %s9 = ssub.s32 1, %s7
  %s10 = scalar_select 0, %s9, %s7
  // Predicated region
  $region2: #{forward.1} parent=0 // pred_check
    _
  $region3: #{forward.1} parent=0 // pred_check_branch
    %12 = sbr.rel (0) target = $region5
  $region4: #{forward.1} parent=0 // pred_region
    _
  $region5: #{forward.1} parent=0 // pred_fallthru
    _
  // Predicated region
  $region6: #{forward.1} parent=0 // pred_check
    _
  $region7: #{forward.1} parent=0 // pred_check_branch
    %14 = sbr.rel (0) target = $region9
  $region8: #{forward.1} parent=0 // pred_region
    _
  $region9: #{forward.1} parent=0 // pred_fallthru
    _
  // Predicated region
  $region10: #{forward.1} parent=0 // pred_check
    _
  $region11: #{forward.1} parent=0 // pred_check_branch
    %16 = sbr.rel (0) target = $region13
  $region12: #{forward.1} parent=0 // pred_region
    _
  $region13: #{forward.1} parent=0 // pred_fallthru
    _
  // Predicated region
  $region14: #{forward.1} parent=0 // pred_check
    _
  $region15: #{forward.1} parent=0 // pred_check_branch
    %18 = sbr.rel (0) target = $region17
  $region16: #{forward.1} parent=0 // pred_region
    _
  $region17: #{forward.1} parent=0 // pred_fallthru
    _
  // Predicated region
  $region18: #{forward.1} parent=0 // pred_check
    _
  $region19: #{forward.1} parent=0 // pred_check_branch
    %20 = sbr.rel (0) target = $region21
  $region20: #{forward.1} parent=0 // pred_region
    _
  $region21: #{forward.1} parent=0 // pred_fallthru
    _
  // Predicated region
  $region22: #{forward.1} parent=0 // pred_check
    _
  $region23: #{forward.1} parent=0 // pred_check_branch
    %22 = sbr.rel (0) target = $region25
  $region24: #{forward.1} parent=0 // pred_region
    _
  $region25: #{forward.1} parent=0 // pred_fallthru
    _
  %v23 = vld [vmem:[%s0] sm:$0xf]
  %v24 = vld [vmem:[%s0 + $0x4] sm:$0xf]
  %v25 = vld [vmem:[%s0 + $0x8] sm:$0xf]
  %v26 = vld [vmem:[%s0 + $0xc] sm:$0xf]
  %v27 = vld [vmem:[%s0 + $0x10] sm:$0xf]
  %v28 = vld [vmem:[%s0 + $0x14] sm:$0xf]
  %v29 = vld [vmem:[%s0 + $0x18] sm:$0xf]
  %v30 = vld [vmem:[%s0 + $0x1c] sm:$0xf]
  %v31 = vld [vmem:[%s0 + $0x20] sm:$0xf]
  %v32 = vld [vmem:[%s0 + $0x24] sm:$0xf]
  %v33 = vld [vmem:[%s0 + $0x28] sm:$0xf]
  %v34 = vld [vmem:[%s0 + $0x2c] sm:$0xf]
  %v35 = vld [vmem:[%s0 + $0x30] sm:$0xf]
  %v36 = vld [vmem:[%s0 + $0x34] sm:$0xf]
  %v37 = vld [vmem:[%s0 + $0x38] sm:$0xf]
  %v38 = vld [vmem:[%s0 + $0x3c] sm:$0xf]
  %v39 = vld [vmem:[%s1] sm:$0xf]
  %v40 = vld [vmem:[%s1 + $0x4] sm:$0xf]
  %v41 = vld [vmem:[%s1 + $0x8] sm:$0xf]
  %v42 = vld [vmem:[%s1 + $0xc] sm:$0xf]
  %v43 = vld [vmem:[%s1 + $0x10] sm:$0xf]
  %v44 = vld [vmem:[%s1 + $0x14] sm:$0xf]
  %v45 = vld [vmem:[%s1 + $0x18] sm:$0xf]
  %v46 = vld [vmem:[%s1 + $0x1c] sm:$0xf]
  %v47 = vld [vmem:[%s1 + $0x20] sm:$0xf]
  %v48 = vld [vmem:[%s1 + $0x24] sm:$0xf]
  %v49 = vld [vmem:[%s1 + $0x28] sm:$0xf]
  %v50 = vld [vmem:[%s1 + $0x2c] sm:$0xf]
  %v51 = vld [vmem:[%s1 + $0x30] sm:$0xf]
  %v52 = vld [vmem:[%s1 + $0x34] sm:$0xf]
  %v53 = vld [vmem:[%s1 + $0x38] sm:$0xf]
  %v54 = vld [vmem:[%s1 + $0x3c] sm:$0xf]
  %v55 = vld [vmem:[%s4] sm:$0xf]
  %v56 = vld [vmem:[%s4 + $0x4] sm:$0xf]
  %v57 = vld [vmem:[%s4 + $0x8] sm:$0xf]
  %v58 = vld [vmem:[%s4 + $0xc] sm:$0xf]
  %v59 = vld [vmem:[%s4 + $0x10] sm:$0xf]
  %v60 = vld [vmem:[%s4 + $0x14] sm:$0xf]
  %v61 = vld [vmem:[%s4 + $0x18] sm:$0xf]
  %v62 = vld [vmem:[%s4 + $0x1c] sm:$0xf]
  %v63 = vld [vmem:[%s4 + $0x20] sm:$0xf]
  %v64 = vld [vmem:[%s4 + $0x24] sm:$0xf]
  %v65 = vld [vmem:[%s4 + $0x28] sm:$0xf]
  %v66 = vld [vmem:[%s4 + $0x2c] sm:$0xf]
  %v67 = vld [vmem:[%s4 + $0x30] sm:$0xf]
  %v68 = vld [vmem:[%s4 + $0x34] sm:$0xf]
  %v69 = vld [vmem:[%s4 + $0x38] sm:$0xf]
  %v70 = vld [vmem:[%s4 + $0x3c] sm:$0xf]
  %v71 = vld [vmem:[%s5] sm:$0x1]
  %v72 = vperm.slane %v71, 0
  %v89 = vunpack.c.l.b16 %v23
  %v90 = vunpack.c.l.b16 %v24
  %v91 = vunpack.c.l.b16 %v25
  %v92 = vunpack.c.l.b16 %v26
  %v93 = vunpack.c.l.b16 %v27
  %v94 = vunpack.c.l.b16 %v28
  %v95 = vunpack.c.l.b16 %v29
  %v96 = vunpack.c.l.b16 %v30
  %v97 = vunpack.c.l.b16 %v31
  %v98 = vunpack.c.l.b16 %v32
  %v99 = vunpack.c.l.b16 %v33
  %v100 = vunpack.c.l.b16 %v34
  %v101 = vunpack.c.l.b16 %v35
  %v102 = vunpack.c.l.b16 %v36
  %v103 = vunpack.c.l.b16 %v37
  %v104 = vunpack.c.l.b16 %v38
  %v105 = vpack.c.b16 %v90, %v89
  %v106 = vpack.c.b16 %v92, %v91
  %v107 = vpack.c.b16 %v94, %v93
  %v108 = vpack.c.b16 %v96, %v95
  %v109 = vpack.c.b16 %v98, %v97
  %v110 = vpack.c.b16 %v100, %v99
  %v111 = vpack.c.b16 %v102, %v101
  %v112 = vpack.c.b16 %v104, %v103
  %v137 = vunpack.c.l.b16 %v55
  %v138 = vunpack.c.l.b16 %v56
  %v139 = vunpack.c.l.b16 %v57
  %v140 = vunpack.c.l.b16 %v58
  %v141 = vunpack.c.l.b16 %v59
  %v142 = vunpack.c.l.b16 %v60
  %v143 = vunpack.c.l.b16 %v61
  %v144 = vunpack.c.l.b16 %v62
  %v145 = vunpack.c.l.b16 %v63
  %v146 = vunpack.c.l.b16 %v64
  %v147 = vunpack.c.l.b16 %v65
  %v148 = vunpack.c.l.b16 %v66
  %v149 = vunpack.c.l.b16 %v67
  %v150 = vunpack.c.l.b16 %v68
  %v151 = vunpack.c.l.b16 %v69
  %v152 = vunpack.c.l.b16 %v70
  %v153 = vpack.c.b16 %v138, %v137
  %v154 = vpack.c.b16 %v140, %v139
  %v155 = vpack.c.b16 %v142, %v141
  %v156 = vpack.c.b16 %v144, %v143
  %v157 = vpack.c.b16 %v146, %v145
  %v158 = vpack.c.b16 %v148, %v147
  %v159 = vpack.c.b16 %v150, %v149
  %v160 = vpack.c.b16 %v152, %v151
  %169 = vmatpush.bf16.msra.mxu0 %v160
  %170 = vmatpush.bf16.msra.mxu0 %v159
  %171 = vmatpush.bf16.msra.mxu0 %v158
  %172 = vmatpush.bf16.msra.mxu0 %v157
  %173 = vmatpush.bf16.msra.mxu0 %v156
  %174 = vmatpush.bf16.msra.mxu0 %v155
  %175 = vmatpush.bf16.msra.mxu0 %v154
  %176 = vmatpush.bf16.msra.mxu0 %v153
  %177 = vmatmul.bf16.gmra.mxu0 %v105
  %v178 = vpop.f32.mrf.mxu0
  %v179 = vadd.f32 %v72, %v178
  %v180 = vpop.f32.mrf.mxu0
  %v181 = vadd.f32 %v72, %v180
  %182 = vmatmul.bf16.gmra.mxu0 %v106
  %v183 = vpop.f32.mrf.mxu0
  %v184 = vadd.f32 %v72, %v183
  %v185 = vpop.f32.mrf.mxu0
  %v186 = vadd.f32 %v72, %v185
  %187 = vmatmul.bf16.gmra.mxu0 %v107
  %v188 = vpop.f32.mrf.mxu0
  %v189 = vadd.f32 %v72, %v188
  %v190 = vpop.f32.mrf.mxu0
  %v191 = vadd.f32 %v72, %v190
  %192 = vmatmul.bf16.gmra.mxu0 %v108
  %v193 = vpop.f32.mrf.mxu0
  %v194 = vadd.f32 %v72, %v193
  %v195 = vpop.f32.mrf.mxu0
  %v196 = vadd.f32 %v72, %v195
  %197 = vmatmul.bf16.gmra.mxu0 %v109
  %v198 = vpop.f32.mrf.mxu0
  %v199 = vadd.f32 %v72, %v198
  %v200 = vpop.f32.mrf.mxu0
  %v201 = vadd.f32 %v72, %v200
  %202 = vmatmul.bf16.gmra.mxu0 %v110
  %v203 = vpop.f32.mrf.mxu0
  %v204 = vadd.f32 %v72, %v203
  %v205 = vpop.f32.mrf.mxu0
  %v206 = vadd.f32 %v72, %v205
  %207 = vmatmul.bf16.gmra.mxu0 %v111
  %v208 = vpop.f32.mrf.mxu0
  %v209 = vadd.f32 %v72, %v208
  %v210 = vpop.f32.mrf.mxu0
  %v211 = vadd.f32 %v72, %v210
  %212 = vmatmul.bf16.gmra.mxu0 %v112
  %v213 = vpop.f32.mrf.mxu0
  %v214 = vadd.f32 %v72, %v213
  %v215 = vpop.f32.mrf.mxu0
  %v216 = vadd.f32 %v72, %v215
  %217 = vdwg.mxu0
  %v218 = vmul.f32 %v179, 0.01
  %v219 = vmul.f32 %v181, 0.01
  %v220 = vmul.f32 %v184, 0.01
  %v221 = vmul.f32 %v186, 0.01
  %v222 = vmul.f32 %v189, 0.01
  %v223 = vmul.f32 %v191, 0.01
  %v224 = vmul.f32 %v194, 0.01
  %v225 = vmul.f32 %v196, 0.01
  %v226 = vmul.f32 %v199, 0.01
  %v227 = vmul.f32 %v201, 0.01
  %v228 = vmul.f32 %v204, 0.01
  %v229 = vmul.f32 %v206, 0.01
  %v230 = vmul.f32 %v209, 0.01
  %v231 = vmul.f32 %v211, 0.01
  %v232 = vmul.f32 %v214, 0.01
  %v233 = vmul.f32 %v216, 0.01
  %v234 = vmax.f32 %v179, %v218
  %v235 = vmax.f32 %v181, %v219
  %v236 = vmax.f32 %v184, %v220
  %v237 = vmax.f32 %v186, %v221
  %v238 = vmax.f32 %v189, %v222
  %v239 = vmax.f32 %v191, %v223
  %v240 = vmax.f32 %v194, %v224
  %v241 = vmax.f32 %v196, %v225
  %v242 = vmax.f32 %v199, %v226
  %v243 = vmax.f32 %v201, %v227
  %v244 = vmax.f32 %v204, %v228
  %v245 = vmax.f32 %v206, %v229
  %v246 = vmax.f32 %v209, %v230
  %v247 = vmax.f32 %v211, %v231
  %v248 = vmax.f32 %v214, %v232
  %v249 = vmax.f32 %v216, %v233
  %v250 = vpack.c.bf16 %v235, %v234
  %v251 = vpack.c.bf16 %v237, %v236
  %v252 = vpack.c.bf16 %v239, %v238
  %v253 = vpack.c.bf16 %v241, %v240
  %v254 = vpack.c.bf16 %v243, %v242
  %v255 = vpack.c.bf16 %v245, %v244
  %v256 = vpack.c.bf16 %v247, %v246
  %v257 = vpack.c.bf16 %v249, %v248
  %v258 = vld [vmem:[%s4 + $0x40] sm:$0xf]
  %v259 = vld [vmem:[%s4 + $0x44] sm:$0xf]
  %v260 = vld [vmem:[%s4 + $0x48] sm:$0xf]
  %v261 = vld [vmem:[%s4 + $0x4c] sm:$0xf]
  %v262 = vld [vmem:[%s4 + $0x50] sm:$0xf]
  %v263 = vld [vmem:[%s4 + $0x54] sm:$0xf]
  %v264 = vld [vmem:[%s4 + $0x58] sm:$0xf]
  %v265 = vld [vmem:[%s4 + $0x5c] sm:$0xf]
  %v266 = vld [vmem:[%s4 + $0x60] sm:$0xf]
  %v267 = vld [vmem:[%s4 + $0x64] sm:$0xf]
  %v268 = vld [vmem:[%s4 + $0x68] sm:$0xf]
  %v269 = vld [vmem:[%s4 + $0x6c] sm:$0xf]
  %v270 = vld [vmem:[%s4 + $0x70] sm:$0xf]
  %v271 = vld [vmem:[%s4 + $0x74] sm:$0xf]
  %v272 = vld [vmem:[%s4 + $0x78] sm:$0xf]
  %v273 = vld [vmem:[%s4 + $0x7c] sm:$0xf]
  %v274 = vld [vmem:[%s5 + $0x1] sm:$0x1]
  %v275 = vperm.slane %v274, 0
  %v292 = vunpack.c.l.b16 %v258
  %v293 = vunpack.c.l.b16 %v259
  %v294 = vunpack.c.l.b16 %v260
  %v295 = vunpack.c.l.b16 %v261
  %v296 = vunpack.c.l.b16 %v262
  %v297 = vunpack.c.l.b16 %v263
  %v298 = vunpack.c.l.b16 %v264
  %v299 = vunpack.c.l.b16 %v265
  %v300 = vunpack.c.l.b16 %v266
  %v301 = vunpack.c.l.b16 %v267
  %v302 = vunpack.c.l.b16 %v268
  %v303 = vunpack.c.l.b16 %v269
  %v304 = vunpack.c.l.b16 %v270
  %v305 = vunpack.c.l.b16 %v271
  %v306 = vunpack.c.l.b16 %v272
  %v307 = vunpack.c.l.b16 %v273
  %v308 = vpack.c.b16 %v293, %v292
  %v309 = vpack.c.b16 %v295, %v294
  %v310 = vpack.c.b16 %v297, %v296
  %v311 = vpack.c.b16 %v299, %v298
  %v312 = vpack.c.b16 %v301, %v300
  %v313 = vpack.c.b16 %v303, %v302
  %v314 = vpack.c.b16 %v305, %v304
  %v315 = vpack.c.b16 %v307, %v306
  %324 = vmatpush.bf16.msra.mxu0 %v315
  %325 = vmatpush.bf16.msra.mxu0 %v314
  %326 = vmatpush.bf16.msra.mxu0 %v313
  %327 = vmatpush.bf16.msra.mxu0 %v312
  %328 = vmatpush.bf16.msra.mxu0 %v311
  %329 = vmatpush.bf16.msra.mxu0 %v310
  %330 = vmatpush.bf16.msra.mxu0 %v309
  %331 = vmatpush.bf16.msra.mxu0 %v308
  %332 = vmatmul.bf16.gmra.mxu0 %v250
  %v333 = vpop.f32.mrf.mxu0
  %v334 = vadd.f32 %v275, %v333
  %v335 = vpop.f32.mrf.mxu0
  %v336 = vadd.f32 %v275, %v335
  %337 = vmatmul.bf16.gmra.mxu0 %v251
  %v338 = vpop.f32.mrf.mxu0
  %v339 = vadd.f32 %v275, %v338
  %v340 = vpop.f32.mrf.mxu0
  %v341 = vadd.f32 %v275, %v340
  %342 = vmatmul.bf16.gmra.mxu0 %v252
  %v343 = vpop.f32.mrf.mxu0
  %v344 = vadd.f32 %v275, %v343
  %v345 = vpop.f32.mrf.mxu0
  %v346 = vadd.f32 %v275, %v345
  %347 = vmatmul.bf16.gmra.mxu0 %v253
  %v348 = vpop.f32.mrf.mxu0
  %v349 = vadd.f32 %v275, %v348
  %v350 = vpop.f32.mrf.mxu0
  %v351 = vadd.f32 %v275, %v350
  %352 = vmatmul.bf16.gmra.mxu0 %v254
  %v353 = vpop.f32.mrf.mxu0
  %v354 = vadd.f32 %v275, %v353
  %v355 = vpop.f32.mrf.mxu0
  %v356 = vadd.f32 %v275, %v355
  %357 = vmatmul.bf16.gmra.mxu0 %v255
  %v358 = vpop.f32.mrf.mxu0
  %v359 = vadd.f32 %v275, %v358
  %v360 = vpop.f32.mrf.mxu0
  %v361 = vadd.f32 %v275, %v360
  %362 = vmatmul.bf16.gmra.mxu0 %v256
  %v363 = vpop.f32.mrf.mxu0
  %v364 = vadd.f32 %v275, %v363
  %v365 = vpop.f32.mrf.mxu0
  %v366 = vadd.f32 %v275, %v365
  %367 = vmatmul.bf16.gmra.mxu0 %v257
  %v368 = vpop.f32.mrf.mxu0
  %v369 = vadd.f32 %v275, %v368
  %v370 = vpop.f32.mrf.mxu0
  %v371 = vadd.f32 %v275, %v370
  %372 = vdwg.mxu0
  %v373 = vpack.c.bf16 %v336, %v334
  %v374 = vpack.c.bf16 %v341, %v339
  %v375 = vpack.c.bf16 %v346, %v344
  %v376 = vpack.c.bf16 %v351, %v349
  %v377 = vpack.c.bf16 %v356, %v354
  %v378 = vpack.c.bf16 %v361, %v359
  %v379 = vpack.c.bf16 %v366, %v364
  %v380 = vpack.c.bf16 %v371, %v369
  %v397 = vunpack.c.l.b16 %v39
  %v398 = vunpack.c.l.b16 %v40
  %v399 = vunpack.c.l.b16 %v41
  %v400 = vunpack.c.l.b16 %v42
  %v401 = vunpack.c.l.b16 %v43
  %v402 = vunpack.c.l.b16 %v44
  %v403 = vunpack.c.l.b16 %v45
  %v404 = vunpack.c.l.b16 %v46
  %v405 = vunpack.c.l.b16 %v47
  %v406 = vunpack.c.l.b16 %v48
  %v407 = vunpack.c.l.b16 %v49
  %v408 = vunpack.c.l.b16 %v50
  %v409 = vunpack.c.l.b16 %v51
  %v410 = vunpack.c.l.b16 %v52
  %v411 = vunpack.c.l.b16 %v53
  %v412 = vunpack.c.l.b16 %v54
  %v413 = vpack.c.b16 %v398, %v397
  %v414 = vpack.c.b16 %v400, %v399
  %v415 = vpack.c.b16 %v402, %v401
  %v416 = vpack.c.b16 %v404, %v403
  %v417 = vpack.c.b16 %v406, %v405
  %v418 = vpack.c.b16 %v408, %v407
  %v419 = vpack.c.b16 %v410, %v409
  %v420 = vpack.c.b16 %v412, %v411
  %429 = vmatpush.bf16.msra.mxu0 %v380
  %430 = vmatpush.bf16.msra.mxu0 %v379
  %431 = vmatpush.bf16.msra.mxu0 %v378
  %432 = vmatpush.bf16.msra.mxu0 %v377
  %433 = vmatpush.bf16.msra.mxu0 %v376
  %434 = vmatpush.bf16.msra.mxu0 %v375
  %435 = vmatpush.bf16.msra.mxu0 %v374
  %436 = vmatpush.bf16.msra.mxu0 %v373
  %437 = vmatmul.bf16.gmra.mxu0 %v413
  %v438 = vpop.f32.mrf.mxu0
  %v439 = vadd.f32 0.0, %v438
  %v440 = vpop.f32.mrf.mxu0
  %v441 = vadd.f32 0.0, %v440
  %442 = vmatmul.bf16.gmra.mxu0 %v414
  %v443 = vpop.f32.mrf.mxu0
  %v444 = vadd.f32 0.0, %v443
  %v445 = vpop.f32.mrf.mxu0
  %v446 = vadd.f32 0.0, %v445
  %447 = vmatmul.bf16.gmra.mxu0 %v415
  %v448 = vpop.f32.mrf.mxu0
  %v449 = vadd.f32 0.0, %v448
  %v450 = vpop.f32.mrf.mxu0
  %v451 = vadd.f32 0.0, %v450
  %452 = vmatmul.bf16.gmra.mxu0 %v416
  %v453 = vpop.f32.mrf.mxu0
  %v454 = vadd.f32 0.0, %v453
  %v455 = vpop.f32.mrf.mxu0
  %v456 = vadd.f32 0.0, %v455
  %457 = vmatmul.bf16.gmra.mxu0 %v417
  %v458 = vpop.f32.mrf.mxu0
  %v459 = vadd.f32 0.0, %v458
  %v460 = vpop.f32.mrf.mxu0
  %v461 = vadd.f32 0.0, %v460
  %462 = vmatmul.bf16.gmra.mxu0 %v418
  %v463 = vpop.f32.mrf.mxu0
  %v464 = vadd.f32 0.0, %v463
  %v465 = vpop.f32.mrf.mxu0
  %v466 = vadd.f32 0.0, %v465
  %467 = vmatmul.bf16.gmra.mxu0 %v419
  %v468 = vpop.f32.mrf.mxu0
  %v469 = vadd.f32 0.0, %v468
  %v470 = vpop.f32.mrf.mxu0
  %v471 = vadd.f32 0.0, %v470
  %472 = vmatmul.bf16.gmra.mxu0 %v420
  %v473 = vpop.f32.mrf.mxu0
  %v474 = vadd.f32 0.0, %v473
  %v475 = vpop.f32.mrf.mxu0
  %v476 = vadd.f32 0.0, %v475
  %477 = vdwg.mxu0
  %v478 = vmul.f32 %v439, 0.01
  %v479 = vmul.f32 %v441, 0.01
  %v480 = vmul.f32 %v444, 0.01
  %v481 = vmul.f32 %v446, 0.01
  %v482 = vmul.f32 %v449, 0.01
  %v483 = vmul.f32 %v451, 0.01
  %v484 = vmul.f32 %v454, 0.01
  %v485 = vmul.f32 %v456, 0.01
  %v486 = vmul.f32 %v459, 0.01
  %v487 = vmul.f32 %v461, 0.01
  %v488 = vmul.f32 %v464, 0.01
  %v489 = vmul.f32 %v466, 0.01
  %v490 = vmul.f32 %v469, 0.01
  %v491 = vmul.f32 %v471, 0.01
  %v492 = vmul.f32 %v474, 0.01
  %v493 = vmul.f32 %v476, 0.01
  %v494 = vmax.f32 %v439, %v478
  %v495 = vmax.f32 %v441, %v479
  %v496 = vmax.f32 %v444, %v480
  %v497 = vmax.f32 %v446, %v481
  %v498 = vmax.f32 %v449, %v482
  %v499 = vmax.f32 %v451, %v483
  %v500 = vmax.f32 %v454, %v484
  %v501 = vmax.f32 %v456, %v485
  %v502 = vmax.f32 %v459, %v486
  %v503 = vmax.f32 %v461, %v487
  %v504 = vmax.f32 %v464, %v488
  %v505 = vmax.f32 %v466, %v489
  %v506 = vmax.f32 %v469, %v490
  %v507 = vmax.f32 %v471, %v491
  %v508 = vmax.f32 %v474, %v492
  %v509 = vmax.f32 %v476, %v493
  %v510 = vpack.c.bf16 %v495, %v494
  %v511 = vpack.c.bf16 %v497, %v496
  %v512 = vpack.c.bf16 %v499, %v498
  %v513 = vpack.c.bf16 %v501, %v500
  %v514 = vpack.c.bf16 %v503, %v502
  %v515 = vpack.c.bf16 %v505, %v504
  %v516 = vpack.c.bf16 %v507, %v506
  %v517 = vpack.c.bf16 %v509, %v508
  %v518 = vld [vmem:[%s4 + $0x80] sm:$0xf]
  %v519 = vld [vmem:[%s4 + $0x84] sm:$0xf]
  %v520 = vld [vmem:[%s4 + $0x88] sm:$0xf]
  %v521 = vld [vmem:[%s4 + $0x8c] sm:$0xf]
  %v522 = vld [vmem:[%s4 + $0x90] sm:$0xf]
  %v523 = vld [vmem:[%s4 + $0x94] sm:$0xf]
  %v524 = vld [vmem:[%s4 + $0x98] sm:$0xf]
  %v525 = vld [vmem:[%s4 + $0x9c] sm:$0xf]
  %v526 = vld [vmem:[%s4 + $0xa0] sm:$0xf]
  %v527 = vld [vmem:[%s4 + $0xa4] sm:$0xf]
  %v528 = vld [vmem:[%s4 + $0xa8] sm:$0xf]
  %v529 = vld [vmem:[%s4 + $0xac] sm:$0xf]
  %v530 = vld [vmem:[%s4 + $0xb0] sm:$0xf]
  %v531 = vld [vmem:[%s4 + $0xb4] sm:$0xf]
  %v532 = vld [vmem:[%s4 + $0xb8] sm:$0xf]
  %v533 = vld [vmem:[%s4 + $0xbc] sm:$0xf]
  %v534 = vld [vmem:[%s5 + $0x2] sm:$0x1]
  %v535 = vperm.slane %v534, 0
  %v552 = vunpack.c.l.b16 %v518
  %v553 = vunpack.c.l.b16 %v519
  %v554 = vunpack.c.l.b16 %v520
  %v555 = vunpack.c.l.b16 %v521
  %v556 = vunpack.c.l.b16 %v522
  %v557 = vunpack.c.l.b16 %v523
  %v558 = vunpack.c.l.b16 %v524
  %v559 = vunpack.c.l.b16 %v525
  %v560 = vunpack.c.l.b16 %v526
  %v561 = vunpack.c.l.b16 %v527
  %v562 = vunpack.c.l.b16 %v528
  %v563 = vunpack.c.l.b16 %v529
  %v564 = vunpack.c.l.b16 %v530
  %v565 = vunpack.c.l.b16 %v531
  %v566 = vunpack.c.l.b16 %v532
  %v567 = vunpack.c.l.b16 %v533
  %v568 = vpack.c.b16 %v553, %v552
  %v569 = vpack.c.b16 %v555, %v554
  %v570 = vpack.c.b16 %v557, %v556
  %v571 = vpack.c.b16 %v559, %v558
  %v572 = vpack.c.b16 %v561, %v560
  %v573 = vpack.c.b16 %v563, %v562
  %v574 = vpack.c.b16 %v565, %v564
  %v575 = vpack.c.b16 %v567, %v566
  %584 = vmatpush.bf16.msra.mxu0 %v575
  %585 = vmatpush.bf16.msra.mxu0 %v574
  %586 = vmatpush.bf16.msra.mxu0 %v573
  %587 = vmatpush.bf16.msra.mxu0 %v572
  %588 = vmatpush.bf16.msra.mxu0 %v571
  %589 = vmatpush.bf16.msra.mxu0 %v570
  %590 = vmatpush.bf16.msra.mxu0 %v569
  %591 = vmatpush.bf16.msra.mxu0 %v568
  %592 = vmatmul.bf16.gmra.mxu0 %v510
  %v593 = vpop.f32.mrf.mxu0
  %v594 = vadd.f32 %v535, %v593
  %v595 = vpop.f32.mrf.mxu0
  %v596 = vadd.f32 %v535, %v595
  %597 = vmatmul.bf16.gmra.mxu0 %v511
  %v598 = vpop.f32.mrf.mxu0
  %v599 = vadd.f32 %v535, %v598
  %v600 = vpop.f32.mrf.mxu0
  %v601 = vadd.f32 %v535, %v600
  %602 = vmatmul.bf16.gmra.mxu0 %v512
  %v603 = vpop.f32.mrf.mxu0
  %v604 = vadd.f32 %v535, %v603
  %v605 = vpop.f32.mrf.mxu0
  %v606 = vadd.f32 %v535, %v605
  %607 = vmatmul.bf16.gmra.mxu0 %v513
  %v608 = vpop.f32.mrf.mxu0
  %v609 = vadd.f32 %v535, %v608
  %v610 = vpop.f32.mrf.mxu0
  %v611 = vadd.f32 %v535, %v610
  %612 = vmatmul.bf16.gmra.mxu0 %v514
  %v613 = vpop.f32.mrf.mxu0
  %v614 = vadd.f32 %v535, %v613
  %v615 = vpop.f32.mrf.mxu0
  %v616 = vadd.f32 %v535, %v615
  %617 = vmatmul.bf16.gmra.mxu0 %v515
  %v618 = vpop.f32.mrf.mxu0
  %v619 = vadd.f32 %v535, %v618
  %v620 = vpop.f32.mrf.mxu0
  %v621 = vadd.f32 %v535, %v620
  %622 = vmatmul.bf16.gmra.mxu0 %v516
  %v623 = vpop.f32.mrf.mxu0
  %v624 = vadd.f32 %v535, %v623
  %v625 = vpop.f32.mrf.mxu0
  %v626 = vadd.f32 %v535, %v625
  %627 = vmatmul.bf16.gmra.mxu0 %v517
  %v628 = vpop.f32.mrf.mxu0
  %v629 = vadd.f32 %v535, %v628
  %v630 = vpop.f32.mrf.mxu0
  %v631 = vadd.f32 %v535, %v630
  %632 = vdwg.mxu0
  %v633 = vmul.f32 %v594, 0.01
  %v634 = vmul.f32 %v596, 0.01
  %v635 = vmul.f32 %v599, 0.01
  %v636 = vmul.f32 %v601, 0.01
  %v637 = vmul.f32 %v604, 0.01
  %v638 = vmul.f32 %v606, 0.01
  %v639 = vmul.f32 %v609, 0.01
  %v640 = vmul.f32 %v611, 0.01
  %v641 = vmul.f32 %v614, 0.01
  %v642 = vmul.f32 %v616, 0.01
  %v643 = vmul.f32 %v619, 0.01
  %v644 = vmul.f32 %v621, 0.01
  %v645 = vmul.f32 %v624, 0.01
  %v646 = vmul.f32 %v626, 0.01
  %v647 = vmul.f32 %v629, 0.01
  %v648 = vmul.f32 %v631, 0.01
  %v649 = vmax.f32 %v594, %v633
  %v650 = vmax.f32 %v596, %v634
  %v651 = vmax.f32 %v599, %v635
  %v652 = vmax.f32 %v601, %v636
  %v653 = vmax.f32 %v604, %v637
  %v654 = vmax.f32 %v606, %v638
  %v655 = vmax.f32 %v609, %v639
  %v656 = vmax.f32 %v611, %v640
  %v657 = vmax.f32 %v614, %v641
  %v658 = vmax.f32 %v616, %v642
  %v659 = vmax.f32 %v619, %v643
  %v660 = vmax.f32 %v621, %v644
  %v661 = vmax.f32 %v624, %v645
  %v662 = vmax.f32 %v626, %v646
  %v663 = vmax.f32 %v629, %v647
  %v664 = vmax.f32 %v631, %v648
  %v665 = vpack.c.bf16 %v650, %v649
  %v666 = vpack.c.bf16 %v652, %v651
  %v667 = vpack.c.bf16 %v654, %v653
  %v668 = vpack.c.bf16 %v656, %v655
  %v669 = vpack.c.bf16 %v658, %v657
  %v670 = vpack.c.bf16 %v660, %v659
  %v671 = vpack.c.bf16 %v662, %v661
  %v672 = vpack.c.bf16 %v664, %v663
  %v673 = vld [vmem:[%s4 + $0xc0] sm:$0xf]
  %v674 = vld [vmem:[%s4 + $0xc4] sm:$0xf]
  %v675 = vld [vmem:[%s4 + $0xc8] sm:$0xf]
  %v676 = vld [vmem:[%s4 + $0xcc] sm:$0xf]
  %v677 = vld [vmem:[%s4 + $0xd0] sm:$0xf]
  %v678 = vld [vmem:[%s4 + $0xd4] sm:$0xf]
  %v679 = vld [vmem:[%s4 + $0xd8] sm:$0xf]
  %v680 = vld [vmem:[%s4 + $0xdc] sm:$0xf]
  %v681 = vld [vmem:[%s4 + $0xe0] sm:$0xf]
  %v682 = vld [vmem:[%s4 + $0xe4] sm:$0xf]
  %v683 = vld [vmem:[%s4 + $0xe8] sm:$0xf]
  %v684 = vld [vmem:[%s4 + $0xec] sm:$0xf]
  %v685 = vld [vmem:[%s4 + $0xf0] sm:$0xf]
  %v686 = vld [vmem:[%s4 + $0xf4] sm:$0xf]
  %v687 = vld [vmem:[%s4 + $0xf8] sm:$0xf]
  %v688 = vld [vmem:[%s4 + $0xfc] sm:$0xf]
  %v689 = vld [vmem:[%s5 + $0x3] sm:$0x1]
  %v690 = vperm.slane %v689, 0
  %v707 = vunpack.c.l.b16 %v673
  %v708 = vunpack.c.l.b16 %v674
  %v709 = vunpack.c.l.b16 %v675
  %v710 = vunpack.c.l.b16 %v676
  %v711 = vunpack.c.l.b16 %v677
  %v712 = vunpack.c.l.b16 %v678
  %v713 = vunpack.c.l.b16 %v679
  %v714 = vunpack.c.l.b16 %v680
  %v715 = vunpack.c.l.b16 %v681
  %v716 = vunpack.c.l.b16 %v682
  %v717 = vunpack.c.l.b16 %v683
  %v718 = vunpack.c.l.b16 %v684
  %v719 = vunpack.c.l.b16 %v685
  %v720 = vunpack.c.l.b16 %v686
  %v721 = vunpack.c.l.b16 %v687
  %v722 = vunpack.c.l.b16 %v688
  %v723 = vpack.c.b16 %v708, %v707
  %v724 = vpack.c.b16 %v710, %v709
  %v725 = vpack.c.b16 %v712, %v711
  %v726 = vpack.c.b16 %v714, %v713
  %v727 = vpack.c.b16 %v716, %v715
  %v728 = vpack.c.b16 %v718, %v717
  %v729 = vpack.c.b16 %v720, %v719
  %v730 = vpack.c.b16 %v722, %v721
  %739 = vmatpush.bf16.msra.mxu0 %v730
  %740 = vmatpush.bf16.msra.mxu0 %v729
  %741 = vmatpush.bf16.msra.mxu0 %v728
  %742 = vmatpush.bf16.msra.mxu0 %v727
  %743 = vmatpush.bf16.msra.mxu0 %v726
  %744 = vmatpush.bf16.msra.mxu0 %v725
  %745 = vmatpush.bf16.msra.mxu0 %v724
  %746 = vmatpush.bf16.msra.mxu0 %v723
  %747 = vmatmul.bf16.gmra.mxu0 %v665
  %v748 = vpop.f32.mrf.mxu0
  %v749 = vadd.f32 %v690, %v748
  %v750 = vpop.f32.mrf.mxu0
  %v751 = vadd.f32 %v690, %v750
  %752 = vmatmul.bf16.gmra.mxu0 %v666
  %v753 = vpop.f32.mrf.mxu0
  %v754 = vadd.f32 %v690, %v753
  %v755 = vpop.f32.mrf.mxu0
  %v756 = vadd.f32 %v690, %v755
  %757 = vmatmul.bf16.gmra.mxu0 %v667
  %v758 = vpop.f32.mrf.mxu0
  %v759 = vadd.f32 %v690, %v758
  %v760 = vpop.f32.mrf.mxu0
  %v761 = vadd.f32 %v690, %v760
  %762 = vmatmul.bf16.gmra.mxu0 %v668
  %v763 = vpop.f32.mrf.mxu0
  %v764 = vadd.f32 %v690, %v763
  %v765 = vpop.f32.mrf.mxu0
  %v766 = vadd.f32 %v690, %v765
  %767 = vmatmul.bf16.gmra.mxu0 %v669
  %v768 = vpop.f32.mrf.mxu0
  %v769 = vadd.f32 %v690, %v768
  %v770 = vpop.f32.mrf.mxu0
  %v771 = vadd.f32 %v690, %v770
  %772 = vmatmul.bf16.gmra.mxu0 %v670
  %v773 = vpop.f32.mrf.mxu0
  %v774 = vadd.f32 %v690, %v773
  %v775 = vpop.f32.mrf.mxu0
  %v776 = vadd.f32 %v690, %v775
  %777 = vmatmul.bf16.gmra.mxu0 %v671
  %v778 = vpop.f32.mrf.mxu0
  %v779 = vadd.f32 %v690, %v778
  %v780 = vpop.f32.mrf.mxu0
  %v781 = vadd.f32 %v690, %v780
  %782 = vmatmul.bf16.gmra.mxu0 %v672
  %v783 = vpop.f32.mrf.mxu0
  %v784 = vadd.f32 %v690, %v783
  %v785 = vpop.f32.mrf.mxu0
  %v786 = vadd.f32 %v690, %v785
  %787 = vdwg.mxu0
  %v788 = vpack.c.bf16 %v751, %v749
  %v789 = vpack.c.bf16 %v756, %v754
  %v790 = vpack.c.bf16 %v761, %v759
  %v791 = vpack.c.bf16 %v766, %v764
  %v792 = vpack.c.bf16 %v771, %v769
  %v793 = vpack.c.bf16 %v776, %v774
  %v794 = vpack.c.bf16 %v781, %v779
  %v795 = vpack.c.bf16 %v786, %v784
  %796 = vmatpush.bf16.msra.mxu0 %v795
  %797 = vmatpush.bf16.msra.mxu0 %v794
  %798 = vmatpush.bf16.msra.mxu0 %v793
  %799 = vmatpush.bf16.msra.mxu0 %v792
  %800 = vmatpush.bf16.msra.mxu0 %v791
  %801 = vmatpush.bf16.msra.mxu0 %v790
  %802 = vmatpush.bf16.msra.mxu0 %v789
  %803 = vmatpush.bf16.msra.mxu0 %v788
  %804 = vmatmul.bf16.gmra.mxu0 %v413
  %v805 = vpop.f32.mrf.mxu0
  %v806 = vadd.f32 0.0, %v805
  %v807 = vpop.f32.mrf.mxu0
  %v808 = vadd.f32 0.0, %v807
  %809 = vmatmul.bf16.gmra.mxu0 %v414
  %v810 = vpop.f32.mrf.mxu0
  %v811 = vadd.f32 0.0, %v810
  %v812 = vpop.f32.mrf.mxu0
  %v813 = vadd.f32 0.0, %v812
  %814 = vmatmul.bf16.gmra.mxu0 %v415
  %v815 = vpop.f32.mrf.mxu0
  %v816 = vadd.f32 0.0, %v815
  %v817 = vpop.f32.mrf.mxu0
  %v818 = vadd.f32 0.0, %v817
  %819 = vmatmul.bf16.gmra.mxu0 %v416
  %v820 = vpop.f32.mrf.mxu0
  %v821 = vadd.f32 0.0, %v820
  %v822 = vpop.f32.mrf.mxu0
  %v823 = vadd.f32 0.0, %v822
  %824 = vmatmul.bf16.gmra.mxu0 %v417
  %v825 = vpop.f32.mrf.mxu0
  %v826 = vadd.f32 0.0, %v825
  %v827 = vpop.f32.mrf.mxu0
  %v828 = vadd.f32 0.0, %v827
  %829 = vmatmul.bf16.gmra.mxu0 %v418
  %v830 = vpop.f32.mrf.mxu0
  %v831 = vadd.f32 0.0, %v830
  %v832 = vpop.f32.mrf.mxu0
  %v833 = vadd.f32 0.0, %v832
  %834 = vmatmul.bf16.gmra.mxu0 %v419
  %v835 = vpop.f32.mrf.mxu0
  %v836 = vadd.f32 0.0, %v835
  %v837 = vpop.f32.mrf.mxu0
  %v838 = vadd.f32 0.0, %v837
  %839 = vmatmul.bf16.gmra.mxu0 %v420
  %v840 = vpop.f32.mrf.mxu0
  %v841 = vadd.f32 0.0, %v840
  %v842 = vpop.f32.mrf.mxu0
  %v843 = vadd.f32 0.0, %v842
  %844 = vdwg.mxu0
  %v845 = vmul.f32 %v806, 0.01
  %v846 = vmul.f32 %v808, 0.01
  %v847 = vmul.f32 %v811, 0.01
  %v848 = vmul.f32 %v813, 0.01
  %v849 = vmul.f32 %v816, 0.01
  %v850 = vmul.f32 %v818, 0.01
  %v851 = vmul.f32 %v821, 0.01
  %v852 = vmul.f32 %v823, 0.01
  %v853 = vmul.f32 %v826, 0.01
  %v854 = vmul.f32 %v828, 0.01
  %v855 = vmul.f32 %v831, 0.01
  %v856 = vmul.f32 %v833, 0.01
  %v857 = vmul.f32 %v836, 0.01
  %v858 = vmul.f32 %v838, 0.01
  %v859 = vmul.f32 %v841, 0.01
  %v860 = vmul.f32 %v843, 0.01
  %v861 = vmax.f32 %v806, %v845
  %v862 = vmax.f32 %v808, %v846
  %v863 = vmax.f32 %v811, %v847
  %v864 = vmax.f32 %v813, %v848
  %v865 = vmax.f32 %v816, %v849
  %v866 = vmax.f32 %v818, %v850
  %v867 = vmax.f32 %v821, %v851
  %v868 = vmax.f32 %v823, %v852
  %v869 = vmax.f32 %v826, %v853
  %v870 = vmax.f32 %v828, %v854
  %v871 = vmax.f32 %v831, %v855
  %v872 = vmax.f32 %v833, %v856
  %v873 = vmax.f32 %v836, %v857
  %v874 = vmax.f32 %v838, %v858
  %v875 = vmax.f32 %v841, %v859
  %v876 = vmax.f32 %v843, %v860
  %v877 = vld [vmem:[%s2] sm:$0xff]
  %v878 = vperm.slane %v877, 0
  %v879 = vlaneseq
  %v880 = vshrl.u32 %v879, 7
  %882 = vset.pattern.permute.xlu0 %v880
  %883 = vperm.xlu0 %882, %v878
  %v884 = vpop.permute.xlu0 %883
  %v885 = vlaneseq
  %v886 = vshrl.u32 %v885, 7
  %v887 = vadd.s32 %v886, 8
  %888 = vset.pattern.permute.xlu0 %v887
  %889 = vperm.xlu0 %888, %v878
  %v890 = vpop.permute.xlu0 %889
  %v891 = vlaneseq
  %v892 = vshrl.u32 %v891, 7
  %v893 = vadd.s32 %v892, 16
  %894 = vset.pattern.permute.xlu0 %v893
  %895 = vperm.xlu0 %894, %v878
  %v896 = vpop.permute.xlu0 %895
  %v897 = vlaneseq
  %v898 = vshrl.u32 %v897, 7
  %v899 = vadd.s32 %v898, 24
  %900 = vset.pattern.permute.xlu0 %v899
  %901 = vperm.xlu0 %900, %v878
  %v902 = vpop.permute.xlu0 %901
  %v903 = vlaneseq
  %v904 = vshrl.u32 %v903, 7
  %v905 = vadd.s32 %v904, 32
  %906 = vset.pattern.permute.xlu0 %v905
  %907 = vperm.xlu0 %906, %v878
  %v908 = vpop.permute.xlu0 %907
  %v909 = vlaneseq
  %v910 = vshrl.u32 %v909, 7
  %v911 = vadd.s32 %v910, 40
  %912 = vset.pattern.permute.xlu0 %v911
  %913 = vperm.xlu0 %912, %v878
  %v914 = vpop.permute.xlu0 %913
  %v915 = vlaneseq
  %v916 = vshrl.u32 %v915, 7
  %v917 = vadd.s32 %v916, 48
  %918 = vset.pattern.permute.xlu0 %v917
  %919 = vperm.xlu0 %918, %v878
  %v920 = vpop.permute.xlu0 %919
  %v921 = vlaneseq
  %v922 = vshrl.u32 %v921, 7
  %v923 = vadd.s32 %v922, 56
  %924 = vset.pattern.permute.xlu0 %v923
  %925 = vperm.xlu0 %924, %v878
  %v926 = vpop.permute.xlu0 %925
  %v927 = vlaneseq
  %v928 = vshrl.u32 %v927, 7
  %v929 = vadd.s32 %v928, 64
  %930 = vset.pattern.permute.xlu0 %v929
  %931 = vperm.xlu0 %930, %v878
  %v932 = vpop.permute.xlu0 %931
  %v933 = vlaneseq
  %v934 = vshrl.u32 %v933, 7
  %v935 = vadd.s32 %v934, 72
  %936 = vset.pattern.permute.xlu0 %v935
  %937 = vperm.xlu0 %936, %v878
  %v938 = vpop.permute.xlu0 %937
  %v939 = vlaneseq
  %v940 = vshrl.u32 %v939, 7
  %v941 = vadd.s32 %v940, 80
  %942 = vset.pattern.permute.xlu0 %v941
  %943 = vperm.xlu0 %942, %v878
  %v944 = vpop.permute.xlu0 %943
  %v945 = vlaneseq
  %v946 = vshrl.u32 %v945, 7
  %v947 = vadd.s32 %v946, 88
  %948 = vset.pattern.permute.xlu0 %v947
  %949 = vperm.xlu0 %948, %v878
  %v950 = vpop.permute.xlu0 %949
  %v951 = vlaneseq
  %v952 = vshrl.u32 %v951, 7
  %v953 = vadd.s32 %v952, 96
  %954 = vset.pattern.permute.xlu0 %v953
  %955 = vperm.xlu0 %954, %v878
  %v956 = vpop.permute.xlu0 %955
  %v957 = vlaneseq
  %v958 = vshrl.u32 %v957, 7
  %v959 = vadd.s32 %v958, 104
  %960 = vset.pattern.permute.xlu0 %v959
  %961 = vperm.xlu0 %960, %v878
  %v962 = vpop.permute.xlu0 %961
  %v963 = vlaneseq
  %v964 = vshrl.u32 %v963, 7
  %v965 = vadd.s32 %v964, 112
  %966 = vset.pattern.permute.xlu0 %v965
  %967 = vperm.xlu0 %966, %v878
  %v968 = vpop.permute.xlu0 %967
  %v969 = vlaneseq
  %v970 = vshrl.u32 %v969, 7
  %v971 = vadd.s32 %v970, 120
  %972 = vset.pattern.permute.xlu0 %v971
  %973 = vperm.xlu0 %972, %v878
  %v974 = vpop.permute.xlu0 %973
  %v975 = vperm.slane %v877, 1
  %v976 = vlaneseq
  %v977 = vshrl.u32 %v976, 7
  %979 = vset.pattern.permute.xlu0 %v977
  %980 = vperm.xlu0 %979, %v975
  %v981 = vpop.permute.xlu0 %980
  %v982 = vlaneseq
  %v983 = vshrl.u32 %v982, 7
  %v984 = vadd.s32 %v983, 8
  %985 = vset.pattern.permute.xlu0 %v984
  %986 = vperm.xlu0 %985, %v975
  %v987 = vpop.permute.xlu0 %986
  %v988 = vlaneseq
  %v989 = vshrl.u32 %v988, 7
  %v990 = vadd.s32 %v989, 16
  %991 = vset.pattern.permute.xlu0 %v990
  %992 = vperm.xlu0 %991, %v975
  %v993 = vpop.permute.xlu0 %992
  %v994 = vlaneseq
  %v995 = vshrl.u32 %v994, 7
  %v996 = vadd.s32 %v995, 24
  %997 = vset.pattern.permute.xlu0 %v996
  %998 = vperm.xlu0 %997, %v975
  %v999 = vpop.permute.xlu0 %998
  %v1000 = vlaneseq
  %v1001 = vshrl.u32 %v1000, 7
  %v1002 = vadd.s32 %v1001, 32
  %1003 = vset.pattern.permute.xlu0 %v1002
  %1004 = vperm.xlu0 %1003, %v975
  %v1005 = vpop.permute.xlu0 %1004
  %v1006 = vlaneseq
  %v1007 = vshrl.u32 %v1006, 7
  %v1008 = vadd.s32 %v1007, 40
  %1009 = vset.pattern.permute.xlu0 %v1008
  %1010 = vperm.xlu0 %1009, %v975
  %v1011 = vpop.permute.xlu0 %1010
  %v1012 = vlaneseq
  %v1013 = vshrl.u32 %v1012, 7
  %v1014 = vadd.s32 %v1013, 48
  %1015 = vset.pattern.permute.xlu0 %v1014
  %1016 = vperm.xlu0 %1015, %v975
  %v1017 = vpop.permute.xlu0 %1016
  %v1018 = vlaneseq
  %v1019 = vshrl.u32 %v1018, 7
  %v1020 = vadd.s32 %v1019, 56
  %1021 = vset.pattern.permute.xlu0 %v1020
  %1022 = vperm.xlu0 %1021, %v975
  %v1023 = vpop.permute.xlu0 %1022
  %v1024 = vlaneseq
  %v1025 = vshrl.u32 %v1024, 7
  %v1026 = vadd.s32 %v1025, 64
  %1027 = vset.pattern.permute.xlu0 %v1026
  %1028 = vperm.xlu0 %1027, %v975
  %v1029 = vpop.permute.xlu0 %1028
  %v1030 = vlaneseq
  %v1031 = vshrl.u32 %v1030, 7
  %v1032 = vadd.s32 %v1031, 72
  %1033 = vset.pattern.permute.xlu0 %v1032
  %1034 = vperm.xlu0 %1033, %v975
  %v1035 = vpop.permute.xlu0 %1034
  %v1036 = vlaneseq
  %v1037 = vshrl.u32 %v1036, 7
  %v1038 = vadd.s32 %v1037, 80
  %1039 = vset.pattern.permute.xlu0 %v1038
  %1040 = vperm.xlu0 %1039, %v975
  %v1041 = vpop.permute.xlu0 %1040
  %v1042 = vlaneseq
  %v1043 = vshrl.u32 %v1042, 7
  %v1044 = vadd.s32 %v1043, 88
  %1045 = vset.pattern.permute.xlu0 %v1044
  %1046 = vperm.xlu0 %1045, %v975
  %v1047 = vpop.permute.xlu0 %1046
  %v1048 = vlaneseq
  %v1049 = vshrl.u32 %v1048, 7
  %v1050 = vadd.s32 %v1049, 96
  %1051 = vset.pattern.permute.xlu0 %v1050
  %1052 = vperm.xlu0 %1051, %v975
  %v1053 = vpop.permute.xlu0 %1052
  %v1054 = vlaneseq
  %v1055 = vshrl.u32 %v1054, 7
  %v1056 = vadd.s32 %v1055, 104
  %1057 = vset.pattern.permute.xlu0 %v1056
  %1058 = vperm.xlu0 %1057, %v975
  %v1059 = vpop.permute.xlu0 %1058
  %v1060 = vlaneseq
  %v1061 = vshrl.u32 %v1060, 7
  %v1062 = vadd.s32 %v1061, 112
  %1063 = vset.pattern.permute.xlu0 %v1062
  %1064 = vperm.xlu0 %1063, %v975
  %v1065 = vpop.permute.xlu0 %1064
  %v1066 = vlaneseq
  %v1067 = vshrl.u32 %v1066, 7
  %v1068 = vadd.s32 %v1067, 120
  %1069 = vset.pattern.permute.xlu0 %v1068
  %1070 = vperm.xlu0 %1069, %v975
  %v1071 = vpop.permute.xlu0 %1070
  %v1072 = vperm.slane %v877, 2
  %v1073 = vlaneseq
  %v1074 = vshrl.u32 %v1073, 7
  %1076 = vset.pattern.permute.xlu0 %v1074
  %1077 = vperm.xlu0 %1076, %v1072
  %v1078 = vpop.permute.xlu0 %1077
  %v1079 = vlaneseq
  %v1080 = vshrl.u32 %v1079, 7
  %v1081 = vadd.s32 %v1080, 8
  %1082 = vset.pattern.permute.xlu0 %v1081
  %1083 = vperm.xlu0 %1082, %v1072
  %v1084 = vpop.permute.xlu0 %1083
  %v1085 = vlaneseq
  %v1086 = vshrl.u32 %v1085, 7
  %v1087 = vadd.s32 %v1086, 16
  %1088 = vset.pattern.permute.xlu0 %v1087
  %1089 = vperm.xlu0 %1088, %v1072
  %v1090 = vpop.permute.xlu0 %1089
  %v1091 = vlaneseq
  %v1092 = vshrl.u32 %v1091, 7
  %v1093 = vadd.s32 %v1092, 24
  %1094 = vset.pattern.permute.xlu0 %v1093
  %1095 = vperm.xlu0 %1094, %v1072
  %v1096 = vpop.permute.xlu0 %1095
  %v1097 = vlaneseq
  %v1098 = vshrl.u32 %v1097, 7
  %v1099 = vadd.s32 %v1098, 32
  %1100 = vset.pattern.permute.xlu0 %v1099
  %1101 = vperm.xlu0 %1100, %v1072
  %v1102 = vpop.permute.xlu0 %1101
  %v1103 = vlaneseq
  %v1104 = vshrl.u32 %v1103, 7
  %v1105 = vadd.s32 %v1104, 40
  %1106 = vset.pattern.permute.xlu0 %v1105
  %1107 = vperm.xlu0 %1106, %v1072
  %v1108 = vpop.permute.xlu0 %1107
  %v1109 = vlaneseq
  %v1110 = vshrl.u32 %v1109, 7
  %v1111 = vadd.s32 %v1110, 48
  %1112 = vset.pattern.permute.xlu0 %v1111
  %1113 = vperm.xlu0 %1112, %v1072
  %v1114 = vpop.permute.xlu0 %1113
  %v1115 = vlaneseq
  %v1116 = vshrl.u32 %v1115, 7
  %v1117 = vadd.s32 %v1116, 56
  %1118 = vset.pattern.permute.xlu0 %v1117
  %1119 = vperm.xlu0 %1118, %v1072
  %v1120 = vpop.permute.xlu0 %1119
  %v1121 = vlaneseq
  %v1122 = vshrl.u32 %v1121, 7
  %v1123 = vadd.s32 %v1122, 64
  %1124 = vset.pattern.permute.xlu0 %v1123
  %1125 = vperm.xlu0 %1124, %v1072
  %v1126 = vpop.permute.xlu0 %1125
  %v1127 = vlaneseq
  %v1128 = vshrl.u32 %v1127, 7
  %v1129 = vadd.s32 %v1128, 72
  %1130 = vset.pattern.permute.xlu0 %v1129
  %1131 = vperm.xlu0 %1130, %v1072
  %v1132 = vpop.permute.xlu0 %1131
  %v1133 = vlaneseq
  %v1134 = vshrl.u32 %v1133, 7
  %v1135 = vadd.s32 %v1134, 80
  %1136 = vset.pattern.permute.xlu0 %v1135
  %1137 = vperm.xlu0 %1136, %v1072
  %v1138 = vpop.permute.xlu0 %1137
  %v1139 = vlaneseq
  %v1140 = vshrl.u32 %v1139, 7
  %v1141 = vadd.s32 %v1140, 88
  %1142 = vset.pattern.permute.xlu0 %v1141
  %1143 = vperm.xlu0 %1142, %v1072
  %v1144 = vpop.permute.xlu0 %1143
  %v1145 = vlaneseq
  %v1146 = vshrl.u32 %v1145, 7
  %v1147 = vadd.s32 %v1146, 96
  %1148 = vset.pattern.permute.xlu0 %v1147
  %1149 = vperm.xlu0 %1148, %v1072
  %v1150 = vpop.permute.xlu0 %1149
  %v1151 = vlaneseq
  %v1152 = vshrl.u32 %v1151, 7
  %v1153 = vadd.s32 %v1152, 104
  %1154 = vset.pattern.permute.xlu0 %v1153
  %1155 = vperm.xlu0 %1154, %v1072
  %v1156 = vpop.permute.xlu0 %1155
  %v1157 = vlaneseq
  %v1158 = vshrl.u32 %v1157, 7
  %v1159 = vadd.s32 %v1158, 112
  %1160 = vset.pattern.permute.xlu0 %v1159
  %1161 = vperm.xlu0 %1160, %v1072
  %v1162 = vpop.permute.xlu0 %1161
  %v1163 = vlaneseq
  %v1164 = vshrl.u32 %v1163, 7
  %v1165 = vadd.s32 %v1164, 120
  %1166 = vset.pattern.permute.xlu0 %v1165
  %1167 = vperm.xlu0 %1166, %v1072
  %v1168 = vpop.permute.xlu0 %1167
  %v1169 = vperm.slane %v877, 3
  %v1170 = vlaneseq
  %v1171 = vshrl.u32 %v1170, 7
  %1173 = vset.pattern.permute.xlu0 %v1171
  %1174 = vperm.xlu0 %1173, %v1169
  %v1175 = vpop.permute.xlu0 %1174
  %v1176 = vlaneseq
  %v1177 = vshrl.u32 %v1176, 7
  %v1178 = vadd.s32 %v1177, 8
  %1179 = vset.pattern.permute.xlu0 %v1178
  %1180 = vperm.xlu0 %1179, %v1169
  %v1181 = vpop.permute.xlu0 %1180
  %v1182 = vlaneseq
  %v1183 = vshrl.u32 %v1182, 7
  %v1184 = vadd.s32 %v1183, 16
  %1185 = vset.pattern.permute.xlu0 %v1184
  %1186 = vperm.xlu0 %1185, %v1169
  %v1187 = vpop.permute.xlu0 %1186
  %v1188 = vlaneseq
  %v1189 = vshrl.u32 %v1188, 7
  %v1190 = vadd.s32 %v1189, 24
  %1191 = vset.pattern.permute.xlu0 %v1190
  %1192 = vperm.xlu0 %1191, %v1169
  %v1193 = vpop.permute.xlu0 %1192
  %v1194 = vlaneseq
  %v1195 = vshrl.u32 %v1194, 7
  %v1196 = vadd.s32 %v1195, 32
  %1197 = vset.pattern.permute.xlu0 %v1196
  %1198 = vperm.xlu0 %1197, %v1169
  %v1199 = vpop.permute.xlu0 %1198
  %v1200 = vlaneseq
  %v1201 = vshrl.u32 %v1200, 7
  %v1202 = vadd.s32 %v1201, 40
  %1203 = vset.pattern.permute.xlu0 %v1202
  %1204 = vperm.xlu0 %1203, %v1169
  %v1205 = vpop.permute.xlu0 %1204
  %v1206 = vlaneseq
  %v1207 = vshrl.u32 %v1206, 7
  %v1208 = vadd.s32 %v1207, 48
  %1209 = vset.pattern.permute.xlu0 %v1208
  %1210 = vperm.xlu0 %1209, %v1169
  %v1211 = vpop.permute.xlu0 %1210
  %v1212 = vlaneseq
  %v1213 = vshrl.u32 %v1212, 7
  %v1214 = vadd.s32 %v1213, 56
  %1215 = vset.pattern.permute.xlu0 %v1214
  %1216 = vperm.xlu0 %1215, %v1169
  %v1217 = vpop.permute.xlu0 %1216
  %v1218 = vlaneseq
  %v1219 = vshrl.u32 %v1218, 7
  %v1220 = vadd.s32 %v1219, 64
  %1221 = vset.pattern.permute.xlu0 %v1220
  %1222 = vperm.xlu0 %1221, %v1169
  %v1223 = vpop.permute.xlu0 %1222
  %v1224 = vlaneseq
  %v1225 = vshrl.u32 %v1224, 7
  %v1226 = vadd.s32 %v1225, 72
  %1227 = vset.pattern.permute.xlu0 %v1226
  %1228 = vperm.xlu0 %1227, %v1169
  %v1229 = vpop.permute.xlu0 %1228
  %v1230 = vlaneseq
  %v1231 = vshrl.u32 %v1230, 7
  %v1232 = vadd.s32 %v1231, 80
  %1233 = vset.pattern.permute.xlu0 %v1232
  %1234 = vperm.xlu0 %1233, %v1169
  %v1235 = vpop.permute.xlu0 %1234
  %v1236 = vlaneseq
  %v1237 = vshrl.u32 %v1236, 7
  %v1238 = vadd.s32 %v1237, 88
  %1239 = vset.pattern.permute.xlu0 %v1238
  %1240 = vperm.xlu0 %1239, %v1169
  %v1241 = vpop.permute.xlu0 %1240
  %v1242 = vlaneseq
  %v1243 = vshrl.u32 %v1242, 7
  %v1244 = vadd.s32 %v1243, 96
  %1245 = vset.pattern.permute.xlu0 %v1244
  %1246 = vperm.xlu0 %1245, %v1169
  %v1247 = vpop.permute.xlu0 %1246
  %v1248 = vlaneseq
  %v1249 = vshrl.u32 %v1248, 7
  %v1250 = vadd.s32 %v1249, 104
  %1251 = vset.pattern.permute.xlu0 %v1250
  %1252 = vperm.xlu0 %1251, %v1169
  %v1253 = vpop.permute.xlu0 %1252
  %v1254 = vlaneseq
  %v1255 = vshrl.u32 %v1254, 7
  %v1256 = vadd.s32 %v1255, 112
  %1257 = vset.pattern.permute.xlu0 %v1256
  %1258 = vperm.xlu0 %1257, %v1169
  %v1259 = vpop.permute.xlu0 %1258
  %v1260 = vlaneseq
  %v1261 = vshrl.u32 %v1260, 7
  %v1262 = vadd.s32 %v1261, 120
  %1263 = vset.pattern.permute.xlu0 %v1262
  %1264 = vperm.xlu0 %1263, %v1169
  %v1265 = vpop.permute.xlu0 %1264
  %v1266 = vperm.slane %v877, 4
  %v1267 = vlaneseq
  %v1268 = vshrl.u32 %v1267, 7
  %1270 = vset.pattern.permute.xlu0 %v1268
  %1271 = vperm.xlu0 %1270, %v1266
  %v1272 = vpop.permute.xlu0 %1271
  %v1273 = vlaneseq
  %v1274 = vshrl.u32 %v1273, 7
  %v1275 = vadd.s32 %v1274, 8
  %1276 = vset.pattern.permute.xlu0 %v1275
  %1277 = vperm.xlu0 %1276, %v1266
  %v1278 = vpop.permute.xlu0 %1277
  %v1279 = vlaneseq
  %v1280 = vshrl.u32 %v1279, 7
  %v1281 = vadd.s32 %v1280, 16
  %1282 = vset.pattern.permute.xlu0 %v1281
  %1283 = vperm.xlu0 %1282, %v1266
  %v1284 = vpop.permute.xlu0 %1283
  %v1285 = vlaneseq
  %v1286 = vshrl.u32 %v1285, 7
  %v1287 = vadd.s32 %v1286, 24
  %1288 = vset.pattern.permute.xlu0 %v1287
  %1289 = vperm.xlu0 %1288, %v1266
  %v1290 = vpop.permute.xlu0 %1289
  %v1291 = vlaneseq
  %v1292 = vshrl.u32 %v1291, 7
  %v1293 = vadd.s32 %v1292, 32
  %1294 = vset.pattern.permute.xlu0 %v1293
  %1295 = vperm.xlu0 %1294, %v1266
  %v1296 = vpop.permute.xlu0 %1295
  %v1297 = vlaneseq
  %v1298 = vshrl.u32 %v1297, 7
  %v1299 = vadd.s32 %v1298, 40
  %1300 = vset.pattern.permute.xlu0 %v1299
  %1301 = vperm.xlu0 %1300, %v1266
  %v1302 = vpop.permute.xlu0 %1301
  %v1303 = vlaneseq
  %v1304 = vshrl.u32 %v1303, 7
  %v1305 = vadd.s32 %v1304, 48
  %1306 = vset.pattern.permute.xlu0 %v1305
  %1307 = vperm.xlu0 %1306, %v1266
  %v1308 = vpop.permute.xlu0 %1307
  %v1309 = vlaneseq
  %v1310 = vshrl.u32 %v1309, 7
  %v1311 = vadd.s32 %v1310, 56
  %1312 = vset.pattern.permute.xlu0 %v1311
  %1313 = vperm.xlu0 %1312, %v1266
  %v1314 = vpop.permute.xlu0 %1313
  %v1315 = vlaneseq
  %v1316 = vshrl.u32 %v1315, 7
  %v1317 = vadd.s32 %v1316, 64
  %1318 = vset.pattern.permute.xlu0 %v1317
  %1319 = vperm.xlu0 %1318, %v1266
  %v1320 = vpop.permute.xlu0 %1319
  %v1321 = vlaneseq
  %v1322 = vshrl.u32 %v1321, 7
  %v1323 = vadd.s32 %v1322, 72
  %1324 = vset.pattern.permute.xlu0 %v1323
  %1325 = vperm.xlu0 %1324, %v1266
  %v1326 = vpop.permute.xlu0 %1325
  %v1327 = vlaneseq
  %v1328 = vshrl.u32 %v1327, 7
  %v1329 = vadd.s32 %v1328, 80
  %1330 = vset.pattern.permute.xlu0 %v1329
  %1331 = vperm.xlu0 %1330, %v1266
  %v1332 = vpop.permute.xlu0 %1331
  %v1333 = vlaneseq
  %v1334 = vshrl.u32 %v1333, 7
  %v1335 = vadd.s32 %v1334, 88
  %1336 = vset.pattern.permute.xlu0 %v1335
  %1337 = vperm.xlu0 %1336, %v1266
  %v1338 = vpop.permute.xlu0 %1337
  %v1339 = vlaneseq
  %v1340 = vshrl.u32 %v1339, 7
  %v1341 = vadd.s32 %v1340, 96
  %1342 = vset.pattern.permute.xlu0 %v1341
  %1343 = vperm.xlu0 %1342, %v1266
  %v1344 = vpop.permute.xlu0 %1343
  %v1345 = vlaneseq
  %v1346 = vshrl.u32 %v1345, 7
  %v1347 = vadd.s32 %v1346, 104
  %1348 = vset.pattern.permute.xlu0 %v1347
  %1349 = vperm.xlu0 %1348, %v1266
  %v1350 = vpop.permute.xlu0 %1349
  %v1351 = vlaneseq
  %v1352 = vshrl.u32 %v1351, 7
  %v1353 = vadd.s32 %v1352, 112
  %1354 = vset.pattern.permute.xlu0 %v1353
  %1355 = vperm.xlu0 %1354, %v1266
  %v1356 = vpop.permute.xlu0 %1355
  %v1357 = vlaneseq
  %v1358 = vshrl.u32 %v1357, 7
  %v1359 = vadd.s32 %v1358, 120
  %1360 = vset.pattern.permute.xlu0 %v1359
  %1361 = vperm.xlu0 %1360, %v1266
  %v1362 = vpop.permute.xlu0 %1361
  %v1363 = vperm.slane %v877, 5
  %v1364 = vlaneseq
  %v1365 = vshrl.u32 %v1364, 7
  %1367 = vset.pattern.permute.xlu0 %v1365
  %1368 = vperm.xlu0 %1367, %v1363
  %v1369 = vpop.permute.xlu0 %1368
  %v1370 = vlaneseq
  %v1371 = vshrl.u32 %v1370, 7
  %v1372 = vadd.s32 %v1371, 8
  %1373 = vset.pattern.permute.xlu0 %v1372
  %1374 = vperm.xlu0 %1373, %v1363
  %v1375 = vpop.permute.xlu0 %1374
  %v1376 = vlaneseq
  %v1377 = vshrl.u32 %v1376, 7
  %v1378 = vadd.s32 %v1377, 16
  %1379 = vset.pattern.permute.xlu0 %v1378
  %1380 = vperm.xlu0 %1379, %v1363
  %v1381 = vpop.permute.xlu0 %1380
  %v1382 = vlaneseq
  %v1383 = vshrl.u32 %v1382, 7
  %v1384 = vadd.s32 %v1383, 24
  %1385 = vset.pattern.permute.xlu0 %v1384
  %1386 = vperm.xlu0 %1385, %v1363
  %v1387 = vpop.permute.xlu0 %1386
  %v1388 = vlaneseq
  %v1389 = vshrl.u32 %v1388, 7
  %v1390 = vadd.s32 %v1389, 32
  %1391 = vset.pattern.permute.xlu0 %v1390
  %1392 = vperm.xlu0 %1391, %v1363
  %v1393 = vpop.permute.xlu0 %1392
  %v1394 = vlaneseq
  %v1395 = vshrl.u32 %v1394, 7
  %v1396 = vadd.s32 %v1395, 40
  %1397 = vset.pattern.permute.xlu0 %v1396
  %1398 = vperm.xlu0 %1397, %v1363
  %v1399 = vpop.permute.xlu0 %1398
  %v1400 = vlaneseq
  %v1401 = vshrl.u32 %v1400, 7
  %v1402 = vadd.s32 %v1401, 48
  %1403 = vset.pattern.permute.xlu0 %v1402
  %1404 = vperm.xlu0 %1403, %v1363
  %v1405 = vpop.permute.xlu0 %1404
  %v1406 = vlaneseq
  %v1407 = vshrl.u32 %v1406, 7
  %v1408 = vadd.s32 %v1407, 56
  %1409 = vset.pattern.permute.xlu0 %v1408
  %1410 = vperm.xlu0 %1409, %v1363
  %v1411 = vpop.permute.xlu0 %1410
  %v1412 = vlaneseq
  %v1413 = vshrl.u32 %v1412, 7
  %v1414 = vadd.s32 %v1413, 64
  %1415 = vset.pattern.permute.xlu0 %v1414
  %1416 = vperm.xlu0 %1415, %v1363
  %v1417 = vpop.permute.xlu0 %1416
  %v1418 = vlaneseq
  %v1419 = vshrl.u32 %v1418, 7
  %v1420 = vadd.s32 %v1419, 72
  %1421 = vset.pattern.permute.xlu0 %v1420
  %1422 = vperm.xlu0 %1421, %v1363
  %v1423 = vpop.permute.xlu0 %1422
  %v1424 = vlaneseq
  %v1425 = vshrl.u32 %v1424, 7
  %v1426 = vadd.s32 %v1425, 80
  %1427 = vset.pattern.permute.xlu0 %v1426
  %1428 = vperm.xlu0 %1427, %v1363
  %v1429 = vpop.permute.xlu0 %1428
  %v1430 = vlaneseq
  %v1431 = vshrl.u32 %v1430, 7
  %v1432 = vadd.s32 %v1431, 88
  %1433 = vset.pattern.permute.xlu0 %v1432
  %1434 = vperm.xlu0 %1433, %v1363
  %v1435 = vpop.permute.xlu0 %1434
  %v1436 = vlaneseq
  %v1437 = vshrl.u32 %v1436, 7
  %v1438 = vadd.s32 %v1437, 96
  %1439 = vset.pattern.permute.xlu0 %v1438
  %1440 = vperm.xlu0 %1439, %v1363
  %v1441 = vpop.permute.xlu0 %1440
  %v1442 = vlaneseq
  %v1443 = vshrl.u32 %v1442, 7
  %v1444 = vadd.s32 %v1443, 104
  %1445 = vset.pattern.permute.xlu0 %v1444
  %1446 = vperm.xlu0 %1445, %v1363
  %v1447 = vpop.permute.xlu0 %1446
  %v1448 = vlaneseq
  %v1449 = vshrl.u32 %v1448, 7
  %v1450 = vadd.s32 %v1449, 112
  %1451 = vset.pattern.permute.xlu0 %v1450
  %1452 = vperm.xlu0 %1451, %v1363
  %v1453 = vpop.permute.xlu0 %1452
  %v1454 = vlaneseq
  %v1455 = vshrl.u32 %v1454, 7
  %v1456 = vadd.s32 %v1455, 120
  %1457 = vset.pattern.permute.xlu0 %v1456
  %1458 = vperm.xlu0 %1457, %v1363
  %v1459 = vpop.permute.xlu0 %1458
  %v1460 = vperm.slane %v877, 6
  %v1461 = vlaneseq
  %v1462 = vshrl.u32 %v1461, 7
  %1464 = vset.pattern.permute.xlu0 %v1462
  %1465 = vperm.xlu0 %1464, %v1460
  %v1466 = vpop.permute.xlu0 %1465
  %v1467 = vlaneseq
  %v1468 = vshrl.u32 %v1467, 7
  %v1469 = vadd.s32 %v1468, 8
  %1470 = vset.pattern.permute.xlu0 %v1469
  %1471 = vperm.xlu0 %1470, %v1460
  %v1472 = vpop.permute.xlu0 %1471
  %v1473 = vlaneseq
  %v1474 = vshrl.u32 %v1473, 7
  %v1475 = vadd.s32 %v1474, 16
  %1476 = vset.pattern.permute.xlu0 %v1475
  %1477 = vperm.xlu0 %1476, %v1460
  %v1478 = vpop.permute.xlu0 %1477
  %v1479 = vlaneseq
  %v1480 = vshrl.u32 %v1479, 7
  %v1481 = vadd.s32 %v1480, 24
  %1482 = vset.pattern.permute.xlu0 %v1481
  %1483 = vperm.xlu0 %1482, %v1460
  %v1484 = vpop.permute.xlu0 %1483
  %v1485 = vlaneseq
  %v1486 = vshrl.u32 %v1485, 7
  %v1487 = vadd.s32 %v1486, 32
  %1488 = vset.pattern.permute.xlu0 %v1487
  %1489 = vperm.xlu0 %1488, %v1460
  %v1490 = vpop.permute.xlu0 %1489
  %v1491 = vlaneseq
  %v1492 = vshrl.u32 %v1491, 7
  %v1493 = vadd.s32 %v1492, 40
  %1494 = vset.pattern.permute.xlu0 %v1493
  %1495 = vperm.xlu0 %1494, %v1460
  %v1496 = vpop.permute.xlu0 %1495
  %v1497 = vlaneseq
  %v1498 = vshrl.u32 %v1497, 7
  %v1499 = vadd.s32 %v1498, 48
  %1500 = vset.pattern.permute.xlu0 %v1499
  %1501 = vperm.xlu0 %1500, %v1460
  %v1502 = vpop.permute.xlu0 %1501
  %v1503 = vlaneseq
  %v1504 = vshrl.u32 %v1503, 7
  %v1505 = vadd.s32 %v1504, 56
  %1506 = vset.pattern.permute.xlu0 %v1505
  %1507 = vperm.xlu0 %1506, %v1460
  %v1508 = vpop.permute.xlu0 %1507
  %v1509 = vlaneseq
  %v1510 = vshrl.u32 %v1509, 7
  %v1511 = vadd.s32 %v1510, 64
  %1512 = vset.pattern.permute.xlu0 %v1511
  %1513 = vperm.xlu0 %1512, %v1460
  %v1514 = vpop.permute.xlu0 %1513
  %v1515 = vlaneseq
  %v1516 = vshrl.u32 %v1515, 7
  %v1517 = vadd.s32 %v1516, 72
  %1518 = vset.pattern.permute.xlu0 %v1517
  %1519 = vperm.xlu0 %1518, %v1460
  %v1520 = vpop.permute.xlu0 %1519
  %v1521 = vlaneseq
  %v1522 = vshrl.u32 %v1521, 7
  %v1523 = vadd.s32 %v1522, 80
  %1524 = vset.pattern.permute.xlu0 %v1523
  %1525 = vperm.xlu0 %1524, %v1460
  %v1526 = vpop.permute.xlu0 %1525
  %v1527 = vlaneseq
  %v1528 = vshrl.u32 %v1527, 7
  %v1529 = vadd.s32 %v1528, 88
  %1530 = vset.pattern.permute.xlu0 %v1529
  %1531 = vperm.xlu0 %1530, %v1460
  %v1532 = vpop.permute.xlu0 %1531
  %v1533 = vlaneseq
  %v1534 = vshrl.u32 %v1533, 7
  %v1535 = vadd.s32 %v1534, 96
  %1536 = vset.pattern.permute.xlu0 %v1535
  %1537 = vperm.xlu0 %1536, %v1460
  %v1538 = vpop.permute.xlu0 %1537
  %v1539 = vlaneseq
  %v1540 = vshrl.u32 %v1539, 7
  %v1541 = vadd.s32 %v1540, 104
  %1542 = vset.pattern.permute.xlu0 %v1541
  %1543 = vperm.xlu0 %1542, %v1460
  %v1544 = vpop.permute.xlu0 %1543
  %v1545 = vlaneseq
  %v1546 = vshrl.u32 %v1545, 7
  %v1547 = vadd.s32 %v1546, 112
  %1548 = vset.pattern.permute.xlu0 %v1547
  %1549 = vperm.xlu0 %1548, %v1460
  %v1550 = vpop.permute.xlu0 %1549
  %v1551 = vlaneseq
  %v1552 = vshrl.u32 %v1551, 7
  %v1553 = vadd.s32 %v1552, 120
  %1554 = vset.pattern.permute.xlu0 %v1553
  %1555 = vperm.xlu0 %1554, %v1460
  %v1556 = vpop.permute.xlu0 %1555
  %v1557 = vperm.slane %v877, 7
  %v1558 = vlaneseq
  %v1559 = vshrl.u32 %v1558, 7
  %1561 = vset.pattern.permute.xlu0 %v1559
  %1562 = vperm.xlu0 %1561, %v1557
  %v1563 = vpop.permute.xlu0 %1562
  %v1564 = vlaneseq
  %v1565 = vshrl.u32 %v1564, 7
  %v1566 = vadd.s32 %v1565, 8
  %1567 = vset.pattern.permute.xlu0 %v1566
  %1568 = vperm.xlu0 %1567, %v1557
  %v1569 = vpop.permute.xlu0 %1568
  %v1570 = vlaneseq
  %v1571 = vshrl.u32 %v1570, 7
  %v1572 = vadd.s32 %v1571, 16
  %1573 = vset.pattern.permute.xlu0 %v1572
  %1574 = vperm.xlu0 %1573, %v1557
  %v1575 = vpop.permute.xlu0 %1574
  %v1576 = vlaneseq
  %v1577 = vshrl.u32 %v1576, 7
  %v1578 = vadd.s32 %v1577, 24
  %1579 = vset.pattern.permute.xlu0 %v1578
  %1580 = vperm.xlu0 %1579, %v1557
  %v1581 = vpop.permute.xlu0 %1580
  %v1582 = vlaneseq
  %v1583 = vshrl.u32 %v1582, 7
  %v1584 = vadd.s32 %v1583, 32
  %1585 = vset.pattern.permute.xlu0 %v1584
  %1586 = vperm.xlu0 %1585, %v1557
  %v1587 = vpop.permute.xlu0 %1586
  %v1588 = vlaneseq
  %v1589 = vshrl.u32 %v1588, 7
  %v1590 = vadd.s32 %v1589, 40
  %1591 = vset.pattern.permute.xlu0 %v1590
  %1592 = vperm.xlu0 %1591, %v1557
  %v1593 = vpop.permute.xlu0 %1592
  %v1594 = vlaneseq
  %v1595 = vshrl.u32 %v1594, 7
  %v1596 = vadd.s32 %v1595, 48
  %1597 = vset.pattern.permute.xlu0 %v1596
  %1598 = vperm.xlu0 %1597, %v1557
  %v1599 = vpop.permute.xlu0 %1598
  %v1600 = vlaneseq
  %v1601 = vshrl.u32 %v1600, 7
  %v1602 = vadd.s32 %v1601, 56
  %1603 = vset.pattern.permute.xlu0 %v1602
  %1604 = vperm.xlu0 %1603, %v1557
  %v1605 = vpop.permute.xlu0 %1604
  %v1606 = vlaneseq
  %v1607 = vshrl.u32 %v1606, 7
  %v1608 = vadd.s32 %v1607, 64
  %1609 = vset.pattern.permute.xlu0 %v1608
  %1610 = vperm.xlu0 %1609, %v1557
  %v1611 = vpop.permute.xlu0 %1610
  %v1612 = vlaneseq
  %v1613 = vshrl.u32 %v1612, 7
  %v1614 = vadd.s32 %v1613, 72
  %1615 = vset.pattern.permute.xlu0 %v1614
  %1616 = vperm.xlu0 %1615, %v1557
  %v1617 = vpop.permute.xlu0 %1616
  %v1618 = vlaneseq
  %v1619 = vshrl.u32 %v1618, 7
  %v1620 = vadd.s32 %v1619, 80
  %1621 = vset.pattern.permute.xlu0 %v1620
  %1622 = vperm.xlu0 %1621, %v1557
  %v1623 = vpop.permute.xlu0 %1622
  %v1624 = vlaneseq
  %v1625 = vshrl.u32 %v1624, 7
  %v1626 = vadd.s32 %v1625, 88
  %1627 = vset.pattern.permute.xlu0 %v1626
  %1628 = vperm.xlu0 %1627, %v1557
  %v1629 = vpop.permute.xlu0 %1628
  %v1630 = vlaneseq
  %v1631 = vshrl.u32 %v1630, 7
  %v1632 = vadd.s32 %v1631, 96
  %1633 = vset.pattern.permute.xlu0 %v1632
  %1634 = vperm.xlu0 %1633, %v1557
  %v1635 = vpop.permute.xlu0 %1634
  %v1636 = vlaneseq
  %v1637 = vshrl.u32 %v1636, 7
  %v1638 = vadd.s32 %v1637, 104
  %1639 = vset.pattern.permute.xlu0 %v1638
  %1640 = vperm.xlu0 %1639, %v1557
  %v1641 = vpop.permute.xlu0 %1640
  %v1642 = vlaneseq
  %v1643 = vshrl.u32 %v1642, 7
  %v1644 = vadd.s32 %v1643, 112
  %1645 = vset.pattern.permute.xlu0 %v1644
  %1646 = vperm.xlu0 %1645, %v1557
  %v1647 = vpop.permute.xlu0 %1646
  %v1648 = vlaneseq
  %v1649 = vshrl.u32 %v1648, 7
  %v1650 = vadd.s32 %v1649, 120
  %1651 = vset.pattern.permute.xlu0 %v1650
  %1652 = vperm.xlu0 %1651, %v1557
  %v1653 = vpop.permute.xlu0 %1652
  %v1654 = vadd.f32 %v861, %v884
  %v1655 = vadd.f32 %v862, %v890
  %v1656 = vadd.f32 %v863, %v896
  %v1657 = vadd.f32 %v864, %v902
  %v1658 = vadd.f32 %v865, %v908
  %v1659 = vadd.f32 %v866, %v914
  %v1660 = vadd.f32 %v867, %v920
  %v1661 = vadd.f32 %v868, %v926
  %v1662 = vadd.f32 %v869, %v932
  %v1663 = vadd.f32 %v870, %v938
  %v1664 = vadd.f32 %v871, %v944
  %v1665 = vadd.f32 %v872, %v950
  %v1666 = vadd.f32 %v873, %v956
  %v1667 = vadd.f32 %v874, %v962
  %v1668 = vadd.f32 %v875, %v968
  %v1669 = vadd.f32 %v876, %v974
  %v1670 = vadd.f32 %v861, %v981
  %v1671 = vadd.f32 %v862, %v987
  %v1672 = vadd.f32 %v863, %v993
  %v1673 = vadd.f32 %v864, %v999
  %v1674 = vadd.f32 %v865, %v1005
  %v1675 = vadd.f32 %v866, %v1011
  %v1676 = vadd.f32 %v867, %v1017
  %v1677 = vadd.f32 %v868, %v1023
  %v1678 = vadd.f32 %v869, %v1029
  %v1679 = vadd.f32 %v870, %v1035
  %v1680 = vadd.f32 %v871, %v1041
  %v1681 = vadd.f32 %v872, %v1047
  %v1682 = vadd.f32 %v873, %v1053
  %v1683 = vadd.f32 %v874, %v1059
  %v1684 = vadd.f32 %v875, %v1065
  %v1685 = vadd.f32 %v876, %v1071
  %v1686 = vadd.f32 %v861, %v1078
  %v1687 = vadd.f32 %v862, %v1084
  %v1688 = vadd.f32 %v863, %v1090
  %v1689 = vadd.f32 %v864, %v1096
  %v1690 = vadd.f32 %v865, %v1102
  %v1691 = vadd.f32 %v866, %v1108
  %v1692 = vadd.f32 %v867, %v1114
  %v1693 = vadd.f32 %v868, %v1120
  %v1694 = vadd.f32 %v869, %v1126
  %v1695 = vadd.f32 %v870, %v1132
  %v1696 = vadd.f32 %v871, %v1138
  %v1697 = vadd.f32 %v872, %v1144
  %v1698 = vadd.f32 %v873, %v1150
  %v1699 = vadd.f32 %v874, %v1156
  %v1700 = vadd.f32 %v875, %v1162
  %v1701 = vadd.f32 %v876, %v1168
  %v1702 = vadd.f32 %v861, %v1175
  %v1703 = vadd.f32 %v862, %v1181
  %v1704 = vadd.f32 %v863, %v1187
  %v1705 = vadd.f32 %v864, %v1193
  %v1706 = vadd.f32 %v865, %v1199
  %v1707 = vadd.f32 %v866, %v1205
  %v1708 = vadd.f32 %v867, %v1211
  %v1709 = vadd.f32 %v868, %v1217
  %v1710 = vadd.f32 %v869, %v1223
  %v1711 = vadd.f32 %v870, %v1229
  %v1712 = vadd.f32 %v871, %v1235
  %v1713 = vadd.f32 %v872, %v1241
  %v1714 = vadd.f32 %v873, %v1247
  %v1715 = vadd.f32 %v874, %v1253
  %v1716 = vadd.f32 %v875, %v1259
  %v1717 = vadd.f32 %v876, %v1265
  %v1718 = vadd.f32 %v861, %v1272
  %v1719 = vadd.f32 %v862, %v1278
  %v1720 = vadd.f32 %v863, %v1284
  %v1721 = vadd.f32 %v864, %v1290
  %v1722 = vadd.f32 %v865, %v1296
  %v1723 = vadd.f32 %v866, %v1302
  %v1724 = vadd.f32 %v867, %v1308
  %v1725 = vadd.f32 %v868, %v1314
  %v1726 = vadd.f32 %v869, %v1320
  %v1727 = vadd.f32 %v870, %v1326
  %v1728 = vadd.f32 %v871, %v1332
  %v1729 = vadd.f32 %v872, %v1338
  %v1730 = vadd.f32 %v873, %v1344
  %v1731 = vadd.f32 %v874, %v1350
  %v1732 = vadd.f32 %v875, %v1356
  %v1733 = vadd.f32 %v876, %v1362
  %v1734 = vadd.f32 %v861, %v1369
  %v1735 = vadd.f32 %v862, %v1375
  %v1736 = vadd.f32 %v863, %v1381
  %v1737 = vadd.f32 %v864, %v1387
  %v1738 = vadd.f32 %v865, %v1393
  %v1739 = vadd.f32 %v866, %v1399
  %v1740 = vadd.f32 %v867, %v1405
  %v1741 = vadd.f32 %v868, %v1411
  %v1742 = vadd.f32 %v869, %v1417
  %v1743 = vadd.f32 %v870, %v1423
  %v1744 = vadd.f32 %v871, %v1429
  %v1745 = vadd.f32 %v872, %v1435
  %v1746 = vadd.f32 %v873, %v1441
  %v1747 = vadd.f32 %v874, %v1447
  %v1748 = vadd.f32 %v875, %v1453
  %v1749 = vadd.f32 %v876, %v1459
  %v1750 = vadd.f32 %v861, %v1466
  %v1751 = vadd.f32 %v862, %v1472
  %v1752 = vadd.f32 %v863, %v1478
  %v1753 = vadd.f32 %v864, %v1484
  %v1754 = vadd.f32 %v865, %v1490
  %v1755 = vadd.f32 %v866, %v1496
  %v1756 = vadd.f32 %v867, %v1502
  %v1757 = vadd.f32 %v868, %v1508
  %v1758 = vadd.f32 %v869, %v1514
  %v1759 = vadd.f32 %v870, %v1520
  %v1760 = vadd.f32 %v871, %v1526
  %v1761 = vadd.f32 %v872, %v1532
  %v1762 = vadd.f32 %v873, %v1538
  %v1763 = vadd.f32 %v874, %v1544
  %v1764 = vadd.f32 %v875, %v1550
  %v1765 = vadd.f32 %v876, %v1556
  %v1766 = vadd.f32 %v861, %v1563
  %v1767 = vadd.f32 %v862, %v1569
  %v1768 = vadd.f32 %v863, %v1575
  %v1769 = vadd.f32 %v864, %v1581
  %v1770 = vadd.f32 %v865, %v1587
  %v1771 = vadd.f32 %v866, %v1593
  %v1772 = vadd.f32 %v867, %v1599
  %v1773 = vadd.f32 %v868, %v1605
  %v1774 = vadd.f32 %v869, %v1611
  %v1775 = vadd.f32 %v870, %v1617
  %v1776 = vadd.f32 %v871, %v1623
  %v1777 = vadd.f32 %v872, %v1629
  %v1778 = vadd.f32 %v873, %v1635
  %v1779 = vadd.f32 %v874, %v1641
  %v1780 = vadd.f32 %v875, %v1647
  %v1781 = vadd.f32 %v876, %v1653
  %v1782 = vmax.f32 %v1654, %v1655
  %v1783 = vmax.f32 %v1782, %v1656
  %v1784 = vmax.f32 %v1783, %v1657
  %v1785 = vmax.f32 %v1784, %v1658
  %v1786 = vmax.f32 %v1785, %v1659
  %v1787 = vmax.f32 %v1786, %v1660
  %v1788 = vmax.f32 %v1787, %v1661
  %v1789 = vmax.f32 %v1788, %v1662
  %v1790 = vmax.f32 %v1789, %v1663
  %v1791 = vmax.f32 %v1790, %v1664
  %v1792 = vmax.f32 %v1791, %v1665
  %v1793 = vmax.f32 %v1792, %v1666
  %v1794 = vmax.f32 %v1793, %v1667
  %v1795 = vmax.f32 %v1794, %v1668
  %v1796 = vmax.f32 %v1795, %v1669
  %v1797 = vrot.slane %v1796, 4
  %v1798 = vmax.f32 %v1796, %v1797
  %v1799 = vrot.slane %v1798, 2
  %v1800 = vmax.f32 %v1798, %v1799
  %v1801 = vrot.slane %v1800, 1
  %v1802 = vmax.f32 %v1800, %v1801
  %v1803 = vmax.f32 %v1670, %v1671
  %v1804 = vmax.f32 %v1803, %v1672
  %v1805 = vmax.f32 %v1804, %v1673
  %v1806 = vmax.f32 %v1805, %v1674
  %v1807 = vmax.f32 %v1806, %v1675
  %v1808 = vmax.f32 %v1807, %v1676
  %v1809 = vmax.f32 %v1808, %v1677
  %v1810 = vmax.f32 %v1809, %v1678
  %v1811 = vmax.f32 %v1810, %v1679
  %v1812 = vmax.f32 %v1811, %v1680
  %v1813 = vmax.f32 %v1812, %v1681
  %v1814 = vmax.f32 %v1813, %v1682
  %v1815 = vmax.f32 %v1814, %v1683
  %v1816 = vmax.f32 %v1815, %v1684
  %v1817 = vmax.f32 %v1816, %v1685
  %v1818 = vrot.slane %v1817, 4
  %v1819 = vmax.f32 %v1817, %v1818
  %v1820 = vrot.slane %v1819, 2
  %v1821 = vmax.f32 %v1819, %v1820
  %v1822 = vrot.slane %v1821, 1
  %v1823 = vmax.f32 %v1821, %v1822
  %v1824 = vmax.f32 %v1686, %v1687
  %v1825 = vmax.f32 %v1824, %v1688
  %v1826 = vmax.f32 %v1825, %v1689
  %v1827 = vmax.f32 %v1826, %v1690
  %v1828 = vmax.f32 %v1827, %v1691
  %v1829 = vmax.f32 %v1828, %v1692
  %v1830 = vmax.f32 %v1829, %v1693
  %v1831 = vmax.f32 %v1830, %v1694
  %v1832 = vmax.f32 %v1831, %v1695
  %v1833 = vmax.f32 %v1832, %v1696
  %v1834 = vmax.f32 %v1833, %v1697
  %v1835 = vmax.f32 %v1834, %v1698
  %v1836 = vmax.f32 %v1835, %v1699
  %v1837 = vmax.f32 %v1836, %v1700
  %v1838 = vmax.f32 %v1837, %v1701
  %v1839 = vrot.slane %v1838, 4
  %v1840 = vmax.f32 %v1838, %v1839
  %v1841 = vrot.slane %v1840, 2
  %v1842 = vmax.f32 %v1840, %v1841
  %v1843 = vrot.slane %v1842, 1
  %v1844 = vmax.f32 %v1842, %v1843
  %v1845 = vmax.f32 %v1702, %v1703
  %v1846 = vmax.f32 %v1845, %v1704
  %v1847 = vmax.f32 %v1846, %v1705
  %v1848 = vmax.f32 %v1847, %v1706
  %v1849 = vmax.f32 %v1848, %v1707
  %v1850 = vmax.f32 %v1849, %v1708
  %v1851 = vmax.f32 %v1850, %v1709
  %v1852 = vmax.f32 %v1851, %v1710
  %v1853 = vmax.f32 %v1852, %v1711
  %v1854 = vmax.f32 %v1853, %v1712
  %v1855 = vmax.f32 %v1854, %v1713
  %v1856 = vmax.f32 %v1855, %v1714
  %v1857 = vmax.f32 %v1856, %v1715
  %v1858 = vmax.f32 %v1857, %v1716
  %v1859 = vmax.f32 %v1858, %v1717
  %v1860 = vrot.slane %v1859, 4
  %v1861 = vmax.f32 %v1859, %v1860
  %v1862 = vrot.slane %v1861, 2
  %v1863 = vmax.f32 %v1861, %v1862
  %v1864 = vrot.slane %v1863, 1
  %v1865 = vmax.f32 %v1863, %v1864
  %v1866 = vmax.f32 %v1718, %v1719
  %v1867 = vmax.f32 %v1866, %v1720
  %v1868 = vmax.f32 %v1867, %v1721
  %v1869 = vmax.f32 %v1868, %v1722
  %v1870 = vmax.f32 %v1869, %v1723
  %v1871 = vmax.f32 %v1870, %v1724
  %v1872 = vmax.f32 %v1871, %v1725
  %v1873 = vmax.f32 %v1872, %v1726
  %v1874 = vmax.f32 %v1873, %v1727
  %v1875 = vmax.f32 %v1874, %v1728
  %v1876 = vmax.f32 %v1875, %v1729
  %v1877 = vmax.f32 %v1876, %v1730
  %v1878 = vmax.f32 %v1877, %v1731
  %v1879 = vmax.f32 %v1878, %v1732
  %v1880 = vmax.f32 %v1879, %v1733
  %v1881 = vrot.slane %v1880, 4
  %v1882 = vmax.f32 %v1880, %v1881
  %v1883 = vrot.slane %v1882, 2
  %v1884 = vmax.f32 %v1882, %v1883
  %v1885 = vrot.slane %v1884, 1
  %v1886 = vmax.f32 %v1884, %v1885
  %v1887 = vmax.f32 %v1734, %v1735
  %v1888 = vmax.f32 %v1887, %v1736
  %v1889 = vmax.f32 %v1888, %v1737
  %v1890 = vmax.f32 %v1889, %v1738
  %v1891 = vmax.f32 %v1890, %v1739
  %v1892 = vmax.f32 %v1891, %v1740
  %v1893 = vmax.f32 %v1892, %v1741
  %v1894 = vmax.f32 %v1893, %v1742
  %v1895 = vmax.f32 %v1894, %v1743
  %v1896 = vmax.f32 %v1895, %v1744
  %v1897 = vmax.f32 %v1896, %v1745
  %v1898 = vmax.f32 %v1897, %v1746
  %v1899 = vmax.f32 %v1898, %v1747
  %v1900 = vmax.f32 %v1899, %v1748
  %v1901 = vmax.f32 %v1900, %v1749
  %v1902 = vrot.slane %v1901, 4
  %v1903 = vmax.f32 %v1901, %v1902
  %v1904 = vrot.slane %v1903, 2
  %v1905 = vmax.f32 %v1903, %v1904
  %v1906 = vrot.slane %v1905, 1
  %v1907 = vmax.f32 %v1905, %v1906
  %v1908 = vmax.f32 %v1750, %v1751
  %v1909 = vmax.f32 %v1908, %v1752
  %v1910 = vmax.f32 %v1909, %v1753
  %v1911 = vmax.f32 %v1910, %v1754
  %v1912 = vmax.f32 %v1911, %v1755
  %v1913 = vmax.f32 %v1912, %v1756
  %v1914 = vmax.f32 %v1913, %v1757
  %v1915 = vmax.f32 %v1914, %v1758
  %v1916 = vmax.f32 %v1915, %v1759
  %v1917 = vmax.f32 %v1916, %v1760
  %v1918 = vmax.f32 %v1917, %v1761
  %v1919 = vmax.f32 %v1918, %v1762
  %v1920 = vmax.f32 %v1919, %v1763
  %v1921 = vmax.f32 %v1920, %v1764
  %v1922 = vmax.f32 %v1921, %v1765
  %v1923 = vrot.slane %v1922, 4
  %v1924 = vmax.f32 %v1922, %v1923
  %v1925 = vrot.slane %v1924, 2
  %v1926 = vmax.f32 %v1924, %v1925
  %v1927 = vrot.slane %v1926, 1
  %v1928 = vmax.f32 %v1926, %v1927
  %v1929 = vmax.f32 %v1766, %v1767
  %v1930 = vmax.f32 %v1929, %v1768
  %v1931 = vmax.f32 %v1930, %v1769
  %v1932 = vmax.f32 %v1931, %v1770
  %v1933 = vmax.f32 %v1932, %v1771
  %v1934 = vmax.f32 %v1933, %v1772
  %v1935 = vmax.f32 %v1934, %v1773
  %v1936 = vmax.f32 %v1935, %v1774
  %v1937 = vmax.f32 %v1936, %v1775
  %v1938 = vmax.f32 %v1937, %v1776
  %v1939 = vmax.f32 %v1938, %v1777
  %v1940 = vmax.f32 %v1939, %v1778
  %v1941 = vmax.f32 %v1940, %v1779
  %v1942 = vmax.f32 %v1941, %v1780
  %v1943 = vmax.f32 %v1942, %v1781
  %v1944 = vrot.slane %v1943, 4
  %v1945 = vmax.f32 %v1943, %v1944
  %v1946 = vrot.slane %v1945, 2
  %v1947 = vmax.f32 %v1945, %v1946
  %v1948 = vrot.slane %v1947, 1
  %v1949 = vmax.f32 %v1947, %v1948
  %v1950 = vld [vmem:[%s3] sm:$0xf]
  %v1951 = vld [vmem:[%s4 + $0x100] sm:$0xf]
  %v1952 = vld [vmem:[%s4 + $0x104] sm:$0xf]
  %v1953 = vld [vmem:[%s4 + $0x108] sm:$0xf]
  %v1954 = vld [vmem:[%s4 + $0x10c] sm:$0xf]
  %v1955 = vld [vmem:[%s4 + $0x110] sm:$0xf]
  %v1956 = vld [vmem:[%s4 + $0x114] sm:$0xf]
  %v1957 = vld [vmem:[%s4 + $0x118] sm:$0xf]
  %v1958 = vld [vmem:[%s4 + $0x11c] sm:$0xf]
  %v1959 = vld [vmem:[%s4 + $0x120] sm:$0xf]
  %v1960 = vld [vmem:[%s4 + $0x124] sm:$0xf]
  %v1961 = vld [vmem:[%s4 + $0x128] sm:$0xf]
  %v1962 = vld [vmem:[%s4 + $0x12c] sm:$0xf]
  %v1963 = vld [vmem:[%s4 + $0x130] sm:$0xf]
  %v1964 = vld [vmem:[%s4 + $0x134] sm:$0xf]
  %v1965 = vld [vmem:[%s4 + $0x138] sm:$0xf]
  %v1966 = vld [vmem:[%s4 + $0x13c] sm:$0xf]
  %v1967 = vld [vmem:[%s5 + $0x4] sm:$0x1]
  %v1968 = vperm.slane %v1967, 0
  %v1985 = vunpack.c.l.b16 %v1951
  %v1986 = vunpack.c.l.b16 %v1952
  %v1987 = vunpack.c.l.b16 %v1953
  %v1988 = vunpack.c.l.b16 %v1954
  %v1989 = vunpack.c.l.b16 %v1955
  %v1990 = vunpack.c.l.b16 %v1956
  %v1991 = vunpack.c.l.b16 %v1957
  %v1992 = vunpack.c.l.b16 %v1958
  %v1993 = vunpack.c.l.b16 %v1959
  %v1994 = vunpack.c.l.b16 %v1960
  %v1995 = vunpack.c.l.b16 %v1961
  %v1996 = vunpack.c.l.b16 %v1962
  %v1997 = vunpack.c.l.b16 %v1963
  %v1998 = vunpack.c.l.b16 %v1964
  %v1999 = vunpack.c.l.b16 %v1965
  %v2000 = vunpack.c.l.b16 %v1966
  %v2001 = vpack.c.b16 %v1986, %v1985
  %v2002 = vpack.c.b16 %v1988, %v1987
  %v2003 = vpack.c.b16 %v1990, %v1989
  %v2004 = vpack.c.b16 %v1992, %v1991
  %v2005 = vpack.c.b16 %v1994, %v1993
  %v2006 = vpack.c.b16 %v1996, %v1995
  %v2007 = vpack.c.b16 %v1998, %v1997
  %v2008 = vpack.c.b16 %v2000, %v1999
  %2017 = vmatpush.bf16.msra.mxu0 %v2008
  %2018 = vmatpush.bf16.msra.mxu0 %v2007
  %2019 = vmatpush.bf16.msra.mxu0 %v2006
  %2020 = vmatpush.bf16.msra.mxu0 %v2005
  %2021 = vmatpush.bf16.msra.mxu0 %v2004
  %2022 = vmatpush.bf16.msra.mxu0 %v2003
  %2023 = vmatpush.bf16.msra.mxu0 %v2002
  %2024 = vmatpush.bf16.msra.mxu0 %v2001
  %2025 = vmatmul.bf16.gmra.mxu0 %v1950
  %v2026 = vpop.f32.mrf.mxu0
  %v2027 = vadd.f32 %v1968, %v2026
  %v2028 = vpop.f32.mrf.mxu0
  %2029 = vdwg.mxu0
  %v2030 = vmul.f32 %v2027, 0.01
  %v2031 = vmax.f32 %v2027, %v2030
  %v2032 = vpack.c.bf16 %v1802, %v1802
  %v2033 = vpack.c.bf16 %v1823, %v1823
  %v2034 = vpack.c.bf16 %v1844, %v1844
  %v2035 = vpack.c.bf16 %v1865, %v1865
  %v2036 = vpack.c.bf16 %v1886, %v1886
  %v2037 = vpack.c.bf16 %v1907, %v1907
  %v2038 = vpack.c.bf16 %v1928, %v1928
  %v2039 = vpack.c.bf16 %v1949, %v1949
  %v2040 = vld [vmem:[%s4 + $0x140] sm:$0xf]
  %v2041 = vld [vmem:[%s4 + $0x144] sm:$0xf]
  %v2042 = vld [vmem:[%s4 + $0x148] sm:$0xf]
  %v2043 = vld [vmem:[%s4 + $0x14c] sm:$0xf]
  %v2044 = vld [vmem:[%s4 + $0x150] sm:$0xf]
  %v2045 = vld [vmem:[%s4 + $0x154] sm:$0xf]
  %v2046 = vld [vmem:[%s4 + $0x158] sm:$0xf]
  %v2047 = vld [vmem:[%s4 + $0x15c] sm:$0xf]
  %v2048 = vld [vmem:[%s4 + $0x160] sm:$0xf]
  %v2049 = vld [vmem:[%s4 + $0x164] sm:$0xf]
  %v2050 = vld [vmem:[%s4 + $0x168] sm:$0xf]
  %v2051 = vld [vmem:[%s4 + $0x16c] sm:$0xf]
  %v2052 = vld [vmem:[%s4 + $0x170] sm:$0xf]
  %v2053 = vld [vmem:[%s4 + $0x174] sm:$0xf]
  %v2054 = vld [vmem:[%s4 + $0x178] sm:$0xf]
  %v2055 = vld [vmem:[%s4 + $0x17c] sm:$0xf]
  %v2056 = vpack.c.bf16 %v2031, %v2031
  %v2057 = vld [vmem:[%s4 + $0x180] sm:$0xf]
  %v2058 = vld [vmem:[%s4 + $0x184] sm:$0xf]
  %v2059 = vld [vmem:[%s4 + $0x188] sm:$0xf]
  %v2060 = vld [vmem:[%s4 + $0x18c] sm:$0xf]
  %v2061 = vld [vmem:[%s4 + $0x190] sm:$0xf]
  %v2062 = vld [vmem:[%s4 + $0x194] sm:$0xf]
  %v2063 = vld [vmem:[%s4 + $0x198] sm:$0xf]
  %v2064 = vld [vmem:[%s4 + $0x19c] sm:$0xf]
  %v2065 = vld [vmem:[%s4 + $0x1a0] sm:$0xf]
  %v2066 = vld [vmem:[%s4 + $0x1a4] sm:$0xf]
  %v2067 = vld [vmem:[%s4 + $0x1a8] sm:$0xf]
  %v2068 = vld [vmem:[%s4 + $0x1ac] sm:$0xf]
  %v2069 = vld [vmem:[%s4 + $0x1b0] sm:$0xf]
  %v2070 = vld [vmem:[%s4 + $0x1b4] sm:$0xf]
  %v2071 = vld [vmem:[%s4 + $0x1b8] sm:$0xf]
  %v2072 = vld [vmem:[%s4 + $0x1bc] sm:$0xf]
  %v2089 = vunpack.c.l.b16 %v2057
  %v2090 = vunpack.c.l.b16 %v2058
  %v2091 = vunpack.c.l.b16 %v2059
  %v2092 = vunpack.c.l.b16 %v2060
  %v2093 = vunpack.c.l.b16 %v2061
  %v2094 = vunpack.c.l.b16 %v2062
  %v2095 = vunpack.c.l.b16 %v2063
  %v2096 = vunpack.c.l.b16 %v2064
  %v2097 = vunpack.c.l.b16 %v2065
  %v2098 = vunpack.c.l.b16 %v2066
  %v2099 = vunpack.c.l.b16 %v2067
  %v2100 = vunpack.c.l.b16 %v2068
  %v2101 = vunpack.c.l.b16 %v2069
  %v2102 = vunpack.c.l.b16 %v2070
  %v2103 = vunpack.c.l.b16 %v2071
  %v2104 = vunpack.c.l.b16 %v2072
  %v2105 = vpack.c.b16 %v2090, %v2089
  %v2106 = vpack.c.b16 %v2092, %v2091
  %v2107 = vpack.c.b16 %v2094, %v2093
  %v2108 = vpack.c.b16 %v2096, %v2095
  %v2109 = vpack.c.b16 %v2098, %v2097
  %v2110 = vpack.c.b16 %v2100, %v2099
  %v2111 = vpack.c.b16 %v2102, %v2101
  %v2112 = vpack.c.b16 %v2104, %v2103
  %2121 = vmatpush.bf16.msra.mxu0 %v2112
  %2122 = vmatpush.bf16.msra.mxu0 %v2111
  %2123 = vmatpush.bf16.msra.mxu0 %v2110
  %2124 = vmatpush.bf16.msra.mxu0 %v2109
  %2125 = vmatpush.bf16.msra.mxu0 %v2108
  %2126 = vmatpush.bf16.msra.mxu0 %v2107
  %2127 = vmatpush.bf16.msra.mxu0 %v2106
  %2128 = vmatpush.bf16.msra.mxu0 %v2105
  %2129 = vmatmul.bf16.gmra.mxu0 %v2056
  %v2130 = vpop.f32.mrf.mxu0
  %v2131 = vadd.f32 0.0, %v2130
  %v2132 = vpop.f32.mrf.mxu0
  %2133 = vdwg.mxu0
  %v2142 = vunpack.c.l.b16 %v2032
  %v2143 = vunpack.c.l.b16 %v2033
  %v2144 = vunpack.c.l.b16 %v2034
  %v2145 = vunpack.c.l.b16 %v2035
  %v2146 = vunpack.c.l.b16 %v2036
  %v2147 = vunpack.c.l.b16 %v2037
  %v2148 = vunpack.c.l.b16 %v2038
  %v2149 = vunpack.c.l.b16 %v2039
  %vm2150 = vcmask 1041409
  %v2151 = vsel %vm2150, %v2143, %v2142
  %vm2152 = vcmask 1042434
  %v2153 = vsel %vm2152, %v2144, %v2151
  %vm2154 = vcmask 1043459
  %v2155 = vsel %vm2154, %v2145, %v2153
  %vm2156 = vcmask 1044484
  %v2157 = vsel %vm2156, %v2146, %v2155
  %vm2158 = vcmask 1045509
  %v2159 = vsel %vm2158, %v2147, %v2157
  %vm2160 = vcmask 1046534
  %v2161 = vsel %vm2160, %v2148, %v2159
  %vm2162 = vcmask 1047559
  %v2163 = vsel %vm2162, %v2149, %v2161
  %v2164 = vpack.c.b16 %v2163, %v2163
  %v2182 = vunpack.c.l.b16 %v2040
  %v2183 = vunpack.c.l.b16 %v2041
  %v2184 = vunpack.c.l.b16 %v2042
  %v2185 = vunpack.c.l.b16 %v2043
  %v2186 = vunpack.c.l.b16 %v2044
  %v2187 = vunpack.c.l.b16 %v2045
  %v2188 = vunpack.c.l.b16 %v2046
  %v2189 = vunpack.c.l.b16 %v2047
  %v2190 = vunpack.c.l.b16 %v2048
  %v2191 = vunpack.c.l.b16 %v2049
  %v2192 = vunpack.c.l.b16 %v2050
  %v2193 = vunpack.c.l.b16 %v2051
  %v2194 = vunpack.c.l.b16 %v2052
  %v2195 = vunpack.c.l.b16 %v2053
  %v2196 = vunpack.c.l.b16 %v2054
  %v2197 = vunpack.c.l.b16 %v2055
  %v2198 = vpack.c.b16 %v2183, %v2182
  %v2199 = vpack.c.b16 %v2185, %v2184
  %v2200 = vpack.c.b16 %v2187, %v2186
  %v2201 = vpack.c.b16 %v2189, %v2188
  %v2202 = vpack.c.b16 %v2191, %v2190
  %v2203 = vpack.c.b16 %v2193, %v2192
  %v2204 = vpack.c.b16 %v2195, %v2194
  %v2205 = vpack.c.b16 %v2197, %v2196
  %2214 = vmatpush.bf16.msra.mxu0 %v2205
  %2215 = vmatpush.bf16.msra.mxu0 %v2204
  %2216 = vmatpush.bf16.msra.mxu0 %v2203
  %2217 = vmatpush.bf16.msra.mxu0 %v2202
  %2218 = vmatpush.bf16.msra.mxu0 %v2201
  %2219 = vmatpush.bf16.msra.mxu0 %v2200
  %2220 = vmatpush.bf16.msra.mxu0 %v2199
  %2221 = vmatpush.bf16.msra.mxu0 %v2198
  %2222 = vmatmul.bf16.gmra.mxu0 %v2164
  %v2223 = vpop.f32.mrf.mxu0
  %v2224 = vadd.f32 %v2131, %v2223
  %v2225 = vpop.f32.mrf.mxu0
  %2226 = vdwg.mxu0
  %v2227 = vld [vmem:[%s5 + $0x5] sm:$0x1]
  %v2228 = vperm.slane %v2227, 0
  %v2229 = vadd.f32 %v2224, %v2228
  %v2230 = vmul.f32 %v2229, 0.01
  %v2231 = vmax.f32 %v2229, %v2230
  %v2232 = vpack.c.bf16 %v2231, %v2231
  %v2233 = vld [vmem:[%s4 + $0x1c0] sm:$0xf]
  %v2234 = vld [vmem:[%s4 + $0x1c4] sm:$0xf]
  %v2235 = vld [vmem:[%s4 + $0x1c8] sm:$0xf]
  %v2236 = vld [vmem:[%s4 + $0x1cc] sm:$0xf]
  %v2237 = vld [vmem:[%s4 + $0x1d0] sm:$0xf]
  %v2238 = vld [vmem:[%s4 + $0x1d4] sm:$0xf]
  %v2239 = vld [vmem:[%s4 + $0x1d8] sm:$0xf]
  %v2240 = vld [vmem:[%s4 + $0x1dc] sm:$0xf]
  %v2241 = vld [vmem:[%s4 + $0x1e0] sm:$0xf]
  %v2242 = vld [vmem:[%s4 + $0x1e4] sm:$0xf]
  %v2243 = vld [vmem:[%s4 + $0x1e8] sm:$0xf]
  %v2244 = vld [vmem:[%s4 + $0x1ec] sm:$0xf]
  %v2245 = vld [vmem:[%s4 + $0x1f0] sm:$0xf]
  %v2246 = vld [vmem:[%s4 + $0x1f4] sm:$0xf]
  %v2247 = vld [vmem:[%s4 + $0x1f8] sm:$0xf]
  %v2248 = vld [vmem:[%s4 + $0x1fc] sm:$0xf]
  %v2249 = vld [vmem:[%s5 + $0x6] sm:$0x1]
  %v2250 = vperm.slane %v2249, 0
  %v2267 = vunpack.c.l.b16 %v2233
  %v2268 = vunpack.c.l.b16 %v2234
  %v2269 = vunpack.c.l.b16 %v2235
  %v2270 = vunpack.c.l.b16 %v2236
  %v2271 = vunpack.c.l.b16 %v2237
  %v2272 = vunpack.c.l.b16 %v2238
  %v2273 = vunpack.c.l.b16 %v2239
  %v2274 = vunpack.c.l.b16 %v2240
  %v2275 = vunpack.c.l.b16 %v2241
  %v2276 = vunpack.c.l.b16 %v2242
  %v2277 = vunpack.c.l.b16 %v2243
  %v2278 = vunpack.c.l.b16 %v2244
  %v2279 = vunpack.c.l.b16 %v2245
  %v2280 = vunpack.c.l.b16 %v2246
  %v2281 = vunpack.c.l.b16 %v2247
  %v2282 = vunpack.c.l.b16 %v2248
  %v2283 = vpack.c.b16 %v2268, %v2267
  %v2284 = vpack.c.b16 %v2270, %v2269
  %v2285 = vpack.c.b16 %v2272, %v2271
  %v2286 = vpack.c.b16 %v2274, %v2273
  %v2287 = vpack.c.b16 %v2276, %v2275
  %v2288 = vpack.c.b16 %v2278, %v2277
  %v2289 = vpack.c.b16 %v2280, %v2279
  %v2290 = vpack.c.b16 %v2282, %v2281
  %2299 = vmatpush.bf16.msra.mxu0 %v2290
  %2300 = vmatpush.bf16.msra.mxu0 %v2289
  %2301 = vmatpush.bf16.msra.mxu0 %v2288
  %2302 = vmatpush.bf16.msra.mxu0 %v2287
  %2303 = vmatpush.bf16.msra.mxu0 %v2286
  %2304 = vmatpush.bf16.msra.mxu0 %v2285
  %2305 = vmatpush.bf16.msra.mxu0 %v2284
  %2306 = vmatpush.bf16.msra.mxu0 %v2283
  %2307 = vmatmul.bf16.gmra.mxu0 %v2232
  %v2308 = vpop.f32.mrf.mxu0
  %v2309 = vadd.f32 %v2250, %v2308
  %v2310 = vpop.f32.mrf.mxu0
  %2311 = vdwg.mxu0
  %2312 = vst [vmem:[%s6] sm:$0xff] %v2309
  // Predicated region
  $region26: #{forward.1} parent=0 // pred_check
    _
  $region27: #{forward.1} parent=0 // pred_check_branch
    %2314 = sbr.rel (0) target = $region29
  $region28: #{forward.1} parent=0 // pred_region
    _
  $region29: #{forward.1} parent=0 // pred_fallthru
    _
  // Predicated region
  $region30: #{forward.1} parent=0 // pred_check
    _
  $region31: #{forward.1} parent=0 // pred_check_branch
    %2316 = sbr.rel (0) target = $region33
  $region32: #{forward.1} parent=0 // pred_region
    _
  $region33: #{forward.1} parent=0 // pred_fallthru
    _

</llo_original>
